<compile_context>
chip_gen: v7x
topology: tpu7x:2x2x1
jax: 0.10.0
libtpu: 0.0.40
codegen_flags: <defaults>
</compile_context>

<pallas_src>
import functools
import math

import numpy as np
import jax
import jax.numpy as jnp
from jax import lax
from jax.experimental import pallas as pl
from jax.experimental.pallas import tpu as pltpu

KS = 3  # kernel_size of `src_word_emb` (global `KS` in the reference model)


# ----------------------------------------------------------------------------
# Sinusoid positional table (numpy glue, matches get_sinusoid_encoding_table)
# ----------------------------------------------------------------------------
def get_sinusoid_encoding_table(n_position, d_hid, padding_idx=None):
    pos = np.arange(n_position)[:, None].astype(np.float64)
    hid = np.arange(d_hid)[None, :]
    angle = pos / np.power(10000.0, 2 * (hid // 2) / d_hid)
    table = np.zeros((n_position, d_hid), dtype=np.float64)
    table[:, 0::2] = np.sin(angle[:, 0::2])
    table[:, 1::2] = np.cos(angle[:, 1::2])
    if padding_idx is not None:
        table[padding_idx] = 0.0
    return jnp.asarray(table, dtype=jnp.float32)


def _layer_norm(x, g, b, eps=1e-5):
    mean = jnp.mean(x, axis=-1, keepdims=True)
    var = jnp.mean(jnp.square(x - mean), axis=-1, keepdims=True)
    return (x - mean) * lax.rsqrt(var + eps) * g + b


# ----------------------------------------------------------------------------
# Fused kernel: conv-embed (layer 0 only) + one EncoderLayer per grid step.
# Operates on one batch element; h stays in VMEM scratch across layers.
# ----------------------------------------------------------------------------
def encoder_kernel(xw_ref, pos_ref, npad_ref, kmask_ref, cw_ref, cb_ref,
                   wq_ref, bq_ref, wk_ref, bk_ref, wv_ref, bv_ref,
                   wo_ref, bo_ref, g1_ref, bn1_ref,
                   w1_ref, b1_ref, w2_ref, b2_ref, g2_ref, bn2_ref,
                   o_ref, h_ref, *, n_head):
    layer = pl.program_id(1)
    L, D = o_ref.shape

    # ---- layer 0 only: Conv1d("same") embedding as one MXU matmul + pos add
    @pl.when(layer == 0)
    def _():
        emb = jnp.dot(xw_ref[...], cw_ref[...],
                      preferred_element_type=jnp.float32)        # (L, D)
        h_ref[...] = emb + cb_ref[...] + pos_ref[...]

    h = h_ref[...]                       # (L, D) f32, resident across layers
    non_pad = npad_ref[...]              # (L, 1) float 0/1
    kmask = kmask_ref[...]               # (1, L) additive 0 / -1e9 on pad keys

    hb = h.astype(jnp.bfloat16)

    # ---- multi-head self-attention (post-LN) -------------------------------
    q = jnp.dot(hb, wq_ref[...], preferred_element_type=jnp.float32) + bq_ref[...]
    k = jnp.dot(hb, wk_ref[...], preferred_element_type=jnp.float32) + bk_ref[...]
    v = jnp.dot(hb, wv_ref[...], preferred_element_type=jnp.float32) + bv_ref[...]

    d_k = q.shape[-1] // n_head
    d_v = v.shape[-1] // n_head
    inv_temp = 1.0 / math.sqrt(d_k)      # ScaledDotProductAttention temperature

    # head-major stacks (cheap leading-axis concat) -> single batched matmuls
    q4 = jnp.stack([q[:, i * d_k:(i + 1) * d_k] for i in range(n_head)],
                   axis=0).astype(jnp.bfloat16)                  # (H, L, d_k)
    k4 = jnp.stack([k[:, i * d_k:(i + 1) * d_k] for i in range(n_head)],
                   axis=0).astype(jnp.bfloat16)
    v4 = jnp.stack([v[:, i * d_v:(i + 1) * d_v] for i in range(n_head)],
                   axis=0).astype(jnp.bfloat16)                  # (H, L, d_v)

    s = jnp.einsum('hqd,hkd->hqk', q4, k4,
                   preferred_element_type=jnp.float32) * inv_temp  # (H, L, L) f32
    s = s + kmask                        # mask padded keys (broadcast over last axis)
    s = s - jnp.max(s, axis=-1, keepdims=True)
    p = jnp.exp(s)
    p = p * pl.reciprocal(jnp.sum(p, axis=-1, keepdims=True), approx=True)
    ctx = jnp.einsum('hqk,hkd->hqd', p.astype(jnp.bfloat16), v4,
                     preferred_element_type=jnp.float32)         # (H, L, d_v) f32

    # output projection accumulated per head (no concatenate), + bias + residual
    wo = wo_ref[...]                                             # (H*d_v, D) bf16
    attn = h + bo_ref[...]
    for i in range(n_head):
        attn = attn + jnp.dot(ctx[i].astype(jnp.bfloat16),
                              wo[i * d_v:(i + 1) * d_v, :],
                              preferred_element_type=jnp.float32)
    y = _layer_norm(attn, g1_ref[...], bn1_ref[...]) * non_pad   # *= non_pad_mask

    # ---- position-wise FFN (post-LN) ---------------------------------------
    f = jnp.dot(y.astype(jnp.bfloat16), w1_ref[...],
                preferred_element_type=jnp.float32) + b1_ref[...]
    f = jnp.maximum(f, 0.0)
    f = jnp.dot(f.astype(jnp.bfloat16), w2_ref[...],
                preferred_element_type=jnp.float32) + b2_ref[...]
    z = _layer_norm(f + y, g2_ref[...], bn2_ref[...]) * non_pad

    h_ref[...] = z

    @pl.when(layer == pl.num_programs(1) - 1)
    def _():
        o_ref[...] = h_ref[...]


# ----------------------------------------------------------------------------
# Wrapper (plain-JAX glue: masks, positional gather, im2col layout)
# ----------------------------------------------------------------------------
def encoder_forward(src_seq, src_pos, params, n_head):
    B, L = src_seq.shape
    D = params['conv_w'].shape[-1]
    n_layers = params['wq'].shape[0]
    h_qk = params['wq'].shape[-1]
    h_v = params['wv'].shape[-1]
    d_inner = params['w1'].shape[-1]

    non_pad = (src_seq != 0.0).astype(jnp.float32)[:, :, None]               # (B, L, 1)
    key_mask = jnp.where(src_seq == 0.0, -1e9, 0.0).astype(jnp.float32)[:, None, :]  # (B,1,L)
    pos_emb = params['pos_table'][src_pos]                                    # (B, L, D)

    pad = (KS - 1) // 2
    x_pad = jnp.pad(src_seq, ((0, 0), (pad, pad)))
    # layout glue only: im2col windows so the conv is a single in-kernel matmul
    x_win = jnp.stack([x_pad[:, t:t + L] for t in range(KS)], axis=-1)        # (B, L, KS)

    b_idx = lambda b, l: (b, 0, 0)   # per-batch block, resident across layers
    l_idx = lambda b, l: (l, 0, 0)   # per-layer weight block (pipelined DMA)
    const2 = lambda b, l: (0, 0)

    in_specs = [
        pl.BlockSpec((None, L, KS), b_idx),        # x_win
        pl.BlockSpec((None, L, D), b_idx),         # pos_emb
        pl.BlockSpec((None, L, 1), b_idx),         # non_pad
        pl.BlockSpec((None, 1, L), b_idx),         # key_mask
        pl.BlockSpec((KS, D), const2),             # conv_w
        pl.BlockSpec((1, D), const2),              # conv_b
        pl.BlockSpec((None, D, h_qk), l_idx),      # wq
        pl.BlockSpec((None, 1, h_qk), l_idx),      # bq
        pl.BlockSpec((None, D, h_qk), l_idx),      # wk
        pl.BlockSpec((None, 1, h_qk), l_idx),      # bk
        pl.BlockSpec((None, D, h_v), l_idx),       # wv
        pl.BlockSpec((None, 1, h_v), l_idx),       # bv
        pl.BlockSpec((None, h_v, D), l_idx),       # wo
        pl.BlockSpec((None, 1, D), l_idx),         # bo
        pl.BlockSpec((None, 1, D), l_idx),         # ln1_g
        pl.BlockSpec((None, 1, D), l_idx),         # ln1_b
        pl.BlockSpec((None, D, d_inner), l_idx),   # w1
        pl.BlockSpec((None, 1, d_inner), l_idx),   # b1
        pl.BlockSpec((None, d_inner, D), l_idx),   # w2
        pl.BlockSpec((None, 1, D), l_idx),         # b2
        pl.BlockSpec((None, 1, D), l_idx),         # ln2_g
        pl.BlockSpec((None, 1, D), l_idx),         # ln2_b
    ]

    out = pl.pallas_call(
        functools.partial(encoder_kernel, n_head=n_head),
        out_shape=jax.ShapeDtypeStruct((B, L, D), jnp.float32),
        grid_spec=pltpu.PrefetchScalarGridSpec(
            num_scalar_prefetch=0,
            grid=(B, n_layers),
            in_specs=in_specs,
            out_specs=pl.BlockSpec((None, L, D), b_idx),
            scratch_shapes=[pltpu.VMEM((L, D), jnp.float32)]),
        compiler_params=pltpu.CompilerParams(
            dimension_semantics=("parallel", "arbitrary"),
            vmem_limit_bytes=32 * 1024 * 1024),
    )(x_win, pos_emb, non_pad, key_mask, params['conv_w'], params['conv_b'],
      params['wq'], params['bq'], params['wk'], params['bk'],
      params['wv'], params['bv'], params['wo'], params['bo'],
      params['ln1_g'], params['ln1_b'], params['w1'], params['b1'],
      params['w2'], params['b2'], params['ln2_g'], params['ln2_b'])
    # TODO(synk): at production sizes keep d_model a multiple of 128 so the
    # output stores are lane-dense (here D=32 keeps the reference layout).
    return (out,)


# ----------------------------------------------------------------------------
# Deterministic parameter construction (shapes follow the module's __init__),
# per-layer tensors stacked along a leading layer axis; matmul weights in bf16.
# ----------------------------------------------------------------------------
def init_params(key, d_feature, n_layers, n_head, d_k, d_v, d_model, d_inner):
    n_position = d_feature + 1
    ks = jax.random.split(key, 7)

    def dense(k, shape, fan_in):
        w = jax.random.normal(k, shape, jnp.float32) / np.sqrt(fan_in)
        return w.astype(jnp.bfloat16)

    params = {
        'conv_w': jax.random.normal(ks[0], (KS, d_model), jnp.float32) * 0.1,
        'conv_b': jnp.zeros((1, d_model), jnp.float32),
        'pos_table': get_sinusoid_encoding_table(n_position, d_model, padding_idx=0),
        'wq': dense(ks[1], (n_layers, d_model, n_head * d_k), d_model),
        'bq': jnp.zeros((n_layers, 1, n_head * d_k), jnp.float32),
        'wk': dense(ks[2], (n_layers, d_model, n_head * d_k), d_model),
        'bk': jnp.zeros((n_layers, 1, n_head * d_k), jnp.float32),
        'wv': dense(ks[3], (n_layers, d_model, n_head * d_v), d_model),
        'bv': jnp.zeros((n_layers, 1, n_head * d_v), jnp.float32),
        'wo': dense(ks[4], (n_layers, n_head * d_v, d_model), n_head * d_v),
        'bo': jnp.zeros((n_layers, 1, d_model), jnp.float32),
        'ln1_g': jnp.ones((n_layers, 1, d_model), jnp.float32),
        'ln1_b': jnp.zeros((n_layers, 1, d_model), jnp.float32),
        'w1': dense(ks[5], (n_layers, d_model, d_inner), d_model),
        'b1': jnp.zeros((n_layers, 1, d_inner), jnp.float32),
        'w2': dense(ks[6], (n_layers, d_inner, d_model), d_inner),
        'b2': jnp.zeros((n_layers, 1, d_model), jnp.float32),
        'ln2_g': jnp.ones((n_layers, 1, d_model), jnp.float32),
        'ln2_b': jnp.zeros((n_layers, 1, d_model), jnp.float32),
    }
    return params


if __name__ == "__main__":
    B = 2
    d_feature = 16   # sequence length L
    n_layers = 2
    n_head = 2
    d_k = d_v = 16
    d_model = 32
    d_inner = 64

    key = jax.random.PRNGKey(0)
    pkey, xkey = jax.random.split(key)
    params = init_params(pkey, d_feature, n_layers, n_head, d_k, d_v, d_model, d_inner)

    # raw signal; keep values away from 0 (0 == PAD), then pad the tail of batch 1
    src_seq = jax.random.normal(xkey, (B, d_feature), jnp.float32) + 3.0
    src_seq = src_seq.at[1, 12:].set(0.0)

    pos = jnp.broadcast_to(jnp.arange(1, d_feature + 1, dtype=jnp.int32)[None, :],
                           (B, d_feature))
    src_pos = jnp.where(src_seq != 0.0, pos, 0)

    (out,) = encoder_forward(src_seq, src_pos, params, n_head)
    out = jax.block_until_ready(out)

    assert out.shape == (B, d_feature, d_model)
    assert bool(jnp.all(jnp.isfinite(out)))
    # padded positions must be zeroed by non_pad_mask
    assert float(jnp.max(jnp.abs(out[1, 12:]))) == 0.0
    print("KERNEL_OK")
</pallas_src>

<mosaic_0001>
module attributes {stable_mosaic.version = 11 : i64} {
  func.func @encoder_kernel(%arg0: i32, %arg1: i32, %arg2: memref<1x16x3xf32, #tpu.memory_space<vmem>>, %arg3: memref<1x16x32xf32, #tpu.memory_space<vmem>>, %arg4: memref<1x16x1xf32, #tpu.memory_space<vmem>>, %arg5: memref<1x1x16xf32, #tpu.memory_space<vmem>>, %arg6: memref<3x32xf32, #tpu.memory_space<vmem>>, %arg7: memref<1x32xf32, #tpu.memory_space<vmem>>, %arg8: memref<1x32x32xbf16, #tpu.memory_space<vmem>>, %arg9: memref<1x1x32xf32, #tpu.memory_space<vmem>>, %arg10: memref<1x32x32xbf16, #tpu.memory_space<vmem>>, %arg11: memref<1x1x32xf32, #tpu.memory_space<vmem>>, %arg12: memref<1x32x32xbf16, #tpu.memory_space<vmem>>, %arg13: memref<1x1x32xf32, #tpu.memory_space<vmem>>, %arg14: memref<1x32x32xbf16, #tpu.memory_space<vmem>>, %arg15: memref<1x1x32xf32, #tpu.memory_space<vmem>>, %arg16: memref<1x1x32xf32, #tpu.memory_space<vmem>>, %arg17: memref<1x1x32xf32, #tpu.memory_space<vmem>>, %arg18: memref<1x32x64xbf16, #tpu.memory_space<vmem>>, %arg19: memref<1x1x64xf32, #tpu.memory_space<vmem>>, %arg20: memref<1x64x32xbf16, #tpu.memory_space<vmem>>, %arg21: memref<1x1x32xf32, #tpu.memory_space<vmem>>, %arg22: memref<1x1x32xf32, #tpu.memory_space<vmem>>, %arg23: memref<1x1x32xf32, #tpu.memory_space<vmem>>, %arg24: memref<1x16x32xf32, #tpu.memory_space<vmem>>, %arg25: memref<16x32xf32, #tpu.memory_space<vmem>>) attributes {dimension_semantics = [#tpu.dimension_semantics<parallel>, #tpu.dimension_semantics<arbitrary>], iteration_bounds = array<i64: 2, 2>, scalar_prefetch = 0 : i64, scratch_operands = 1 : i64, tpu.core_type = #tpu.core_type<tc>, window_params = [{transform_indices = @transform_0, window_bounds = array<i64: 1, 16, 3>}, {transform_indices = @transform_1, window_bounds = array<i64: 1, 16, 32>}, {transform_indices = @transform_2, window_bounds = array<i64: 1, 16, 1>}, {transform_indices = @transform_3, window_bounds = array<i64: 1, 1, 16>}, {pipeline_mode = #tpu.pipeline_mode<synchronous>, transform_indices = @transform_4, window_bounds = array<i64: 3, 32>}, {pipeline_mode = #tpu.pipeline_mode<synchronous>, transform_indices = @transform_5, window_bounds = array<i64: 1, 32>}, {transform_indices = @transform_6, window_bounds = array<i64: 1, 32, 32>}, {transform_indices = @transform_7, window_bounds = array<i64: 1, 1, 32>}, {transform_indices = @transform_8, window_bounds = array<i64: 1, 32, 32>}, {transform_indices = @transform_9, window_bounds = array<i64: 1, 1, 32>}, {transform_indices = @transform_10, window_bounds = array<i64: 1, 32, 32>}, {transform_indices = @transform_11, window_bounds = array<i64: 1, 1, 32>}, {transform_indices = @transform_12, window_bounds = array<i64: 1, 32, 32>}, {transform_indices = @transform_13, window_bounds = array<i64: 1, 1, 32>}, {transform_indices = @transform_14, window_bounds = array<i64: 1, 1, 32>}, {transform_indices = @transform_15, window_bounds = array<i64: 1, 1, 32>}, {transform_indices = @transform_16, window_bounds = array<i64: 1, 32, 64>}, {transform_indices = @transform_17, window_bounds = array<i64: 1, 1, 64>}, {transform_indices = @transform_18, window_bounds = array<i64: 1, 64, 32>}, {transform_indices = @transform_19, window_bounds = array<i64: 1, 1, 32>}, {transform_indices = @transform_20, window_bounds = array<i64: 1, 1, 32>}, {transform_indices = @transform_21, window_bounds = array<i64: 1, 1, 32>}, {transform_indices = @transform_22, window_bounds = array<i64: 1, 16, 32>}]} {
    %c0_i32 = arith.constant 0 : i32
    %0 = arith.cmpi eq, %arg1, %c0_i32 : i32
    %1 = arith.extui %0 : i1 to i32
    %c0_i32_0 = arith.constant 0 : i32
    %2 = arith.cmpi ne, %1, %c0_i32_0 : i32
    scf.if %2 {
      %c0_81 = arith.constant 0 : index
      %c0_82 = arith.constant 0 : index
      %c0_83 = arith.constant 0 : index
      %163 = vector.load %arg2[%c0_81, %c0_82, %c0_83] : memref<1x16x3xf32, #tpu.memory_space<vmem>>, vector<1x16x3xf32>
      %164 = vector.shape_cast %163 : vector<1x16x3xf32> to vector<16x3xf32>
      %c0_84 = arith.constant 0 : index
      %c0_85 = arith.constant 0 : index
      %165 = vector.load %arg6[%c0_84, %c0_85] : memref<3x32xf32, #tpu.memory_space<vmem>>, vector<3x32xf32>
      %cst_86 = arith.constant dense<0.000000e+00> : vector<16x32xf32>
      %166 = tpu.matmul %164, %165, %cst_86 {dimension_numbers = #tpu.dot_dimension_numbers<[1], [0], [0], [1], [0, 0, 1, 1], [], []>} : vector<16x3xf32>, vector<3x32xf32>, vector<16x32xf32> -> vector<16x32xf32>
      %c0_87 = arith.constant 0 : index
      %c0_88 = arith.constant 0 : index
      %167 = vector.load %arg7[%c0_87, %c0_88] : memref<1x32xf32, #tpu.memory_space<vmem>>, vector<1x32xf32>
      %168 = vector.broadcast %167 : vector<1x32xf32> to vector<16x32xf32>
      %169 = arith.addf %166, %168 : vector<16x32xf32>
      %c0_89 = arith.constant 0 : index
      %c0_90 = arith.constant 0 : index
      %c0_91 = arith.constant 0 : index
      %170 = vector.load %arg3[%c0_89, %c0_90, %c0_91] : memref<1x16x32xf32, #tpu.memory_space<vmem>>, vector<1x16x32xf32>
      %171 = vector.shape_cast %170 : vector<1x16x32xf32> to vector<16x32xf32>
      %172 = arith.addf %169, %171 : vector<16x32xf32>
      %c0_92 = arith.constant 0 : index
      %c0_93 = arith.constant 0 : index
      %173 = vector.load %arg25[%c0_92, %c0_93] : memref<16x32xf32, #tpu.memory_space<vmem>>, vector<16x32xf32>
      tpu.vector_store %arg25[%c0_92, %c0_93], %172 {strides = array<i32>} : memref<16x32xf32, #tpu.memory_space<vmem>>, vector<16x32xf32>,
    } else {
    }
    %c0 = arith.constant 0 : index
    %c0_1 = arith.constant 0 : index
    %3 = vector.load %arg25[%c0, %c0_1] : memref<16x32xf32, #tpu.memory_space<vmem>>, vector<16x32xf32>
    %c0_2 = arith.constant 0 : index
    %c0_3 = arith.constant 0 : index
    %c0_4 = arith.constant 0 : index
    %4 = vector.load %arg4[%c0_2, %c0_3, %c0_4] : memref<1x16x1xf32, #tpu.memory_space<vmem>>, vector<1x16x1xf32>
    %5 = vector.shape_cast %4 : vector<1x16x1xf32> to vector<16x1xf32>
    %c0_5 = arith.constant 0 : index
    %c0_6 = arith.constant 0 : index
    %c0_7 = arith.constant 0 : index
    %6 = vector.load %arg5[%c0_5, %c0_6, %c0_7] : memref<1x1x16xf32, #tpu.memory_space<vmem>>, vector<1x1x16xf32>
    %7 = vector.shape_cast %6 : vector<1x1x16xf32> to vector<1x16xf32>
    %8 = arith.truncf %3 : vector<16x32xf32> to vector<16x32xbf16>
    %c0_8 = arith.constant 0 : index
    %c0_9 = arith.constant 0 : index
    %c0_10 = arith.constant 0 : index
    %9 = vector.load %arg8[%c0_8, %c0_9, %c0_10] : memref<1x32x32xbf16, #tpu.memory_space<vmem>>, vector<1x32x32xbf16>
    %10 = vector.shape_cast %9 : vector<1x32x32xbf16> to vector<32x32xbf16>
    %cst = arith.constant dense<0.000000e+00> : vector<16x32xf32>
    %11 = tpu.matmul %8, %10, %cst {dimension_numbers = #tpu.dot_dimension_numbers<[1], [0], [0], [1], [0, 0, 1, 1], [], []>} : vector<16x32xbf16>, vector<32x32xbf16>, vector<16x32xf32> -> vector<16x32xf32>
    %c0_11 = arith.constant 0 : index
    %c0_12 = arith.constant 0 : index
    %c0_13 = arith.constant 0 : index
    %12 = vector.load %arg9[%c0_11, %c0_12, %c0_13] : memref<1x1x32xf32, #tpu.memory_space<vmem>>, vector<1x1x32xf32>
    %13 = vector.shape_cast %12 : vector<1x1x32xf32> to vector<1x32xf32>
    %14 = vector.broadcast %13 : vector<1x32xf32> to vector<16x32xf32>
    %15 = arith.addf %11, %14 : vector<16x32xf32>
    %c0_14 = arith.constant 0 : index
    %c0_15 = arith.constant 0 : index
    %c0_16 = arith.constant 0 : index
    %16 = vector.load %arg10[%c0_14, %c0_15, %c0_16] : memref<1x32x32xbf16, #tpu.memory_space<vmem>>, vector<1x32x32xbf16>
    %17 = vector.shape_cast %16 : vector<1x32x32xbf16> to vector<32x32xbf16>
    %cst_17 = arith.constant dense<0.000000e+00> : vector<16x32xf32>
    %18 = tpu.matmul %8, %17, %cst_17 {dimension_numbers = #tpu.dot_dimension_numbers<[1], [0], [0], [1], [0, 0, 1, 1], [], []>} : vector<16x32xbf16>, vector<32x32xbf16>, vector<16x32xf32> -> vector<16x32xf32>
    %c0_18 = arith.constant 0 : index
    %c0_19 = arith.constant 0 : index
    %c0_20 = arith.constant 0 : index
    %19 = vector.load %arg11[%c0_18, %c0_19, %c0_20] : memref<1x1x32xf32, #tpu.memory_space<vmem>>, vector<1x1x32xf32>
    %20 = vector.shape_cast %19 : vector<1x1x32xf32> to vector<1x32xf32>
    %21 = vector.broadcast %20 : vector<1x32xf32> to vector<16x32xf32>
    %22 = arith.addf %18, %21 : vector<16x32xf32>
    %c0_21 = arith.constant 0 : index
    %c0_22 = arith.constant 0 : index
    %c0_23 = arith.constant 0 : index
    %23 = vector.load %arg12[%c0_21, %c0_22, %c0_23] : memref<1x32x32xbf16, #tpu.memory_space<vmem>>, vector<1x32x32xbf16>
    %24 = vector.shape_cast %23 : vector<1x32x32xbf16> to vector<32x32xbf16>
    %cst_24 = arith.constant dense<0.000000e+00> : vector<16x32xf32>
    %25 = tpu.matmul %8, %24, %cst_24 {dimension_numbers = #tpu.dot_dimension_numbers<[1], [0], [0], [1], [0, 0, 1, 1], [], []>} : vector<16x32xbf16>, vector<32x32xbf16>, vector<16x32xf32> -> vector<16x32xf32>
    %c0_25 = arith.constant 0 : index
    %c0_26 = arith.constant 0 : index
    %c0_27 = arith.constant 0 : index
    %26 = vector.load %arg13[%c0_25, %c0_26, %c0_27] : memref<1x1x32xf32, #tpu.memory_space<vmem>>, vector<1x1x32xf32>
    %27 = vector.shape_cast %26 : vector<1x1x32xf32> to vector<1x32xf32>
    %28 = vector.broadcast %27 : vector<1x32xf32> to vector<16x32xf32>
    %29 = arith.addf %25, %28 : vector<16x32xf32>
    %30 = vector.extract_strided_slice %15 {offsets = [0, 0], sizes = [16, 16], strides = [1, 1]} : vector<16x32xf32> to vector<16x16xf32>
    %31 = vector.extract_strided_slice %15 {offsets = [0, 16], sizes = [16, 16], strides = [1, 1]} : vector<16x32xf32> to vector<16x16xf32>
    %32 = vector.shape_cast %30 : vector<16x16xf32> to vector<1x16x16xf32>
    %33 = vector.shape_cast %31 : vector<16x16xf32> to vector<1x16x16xf32>
    %34 = tpu.concatenate %32, %33 in 0 : vector<1x16x16xf32>, vector<1x16x16xf32> -> vector<2x16x16xf32>
    %35 = arith.truncf %34 : vector<2x16x16xf32> to vector<2x16x16xbf16>
    %36 = vector.extract_strided_slice %22 {offsets = [0, 0], sizes = [16, 16], strides = [1, 1]} : vector<16x32xf32> to vector<16x16xf32>
    %37 = vector.extract_strided_slice %22 {offsets = [0, 16], sizes = [16, 16], strides = [1, 1]} : vector<16x32xf32> to vector<16x16xf32>
    %38 = vector.shape_cast %36 : vector<16x16xf32> to vector<1x16x16xf32>
    %39 = vector.shape_cast %37 : vector<16x16xf32> to vector<1x16x16xf32>
    %40 = tpu.concatenate %38, %39 in 0 : vector<1x16x16xf32>, vector<1x16x16xf32> -> vector<2x16x16xf32>
    %41 = arith.truncf %40 : vector<2x16x16xf32> to vector<2x16x16xbf16>
    %42 = vector.extract_strided_slice %29 {offsets = [0, 0], sizes = [16, 16], strides = [1, 1]} : vector<16x32xf32> to vector<16x16xf32>
    %43 = vector.extract_strided_slice %29 {offsets = [0, 16], sizes = [16, 16], strides = [1, 1]} : vector<16x32xf32> to vector<16x16xf32>
    %44 = vector.shape_cast %42 : vector<16x16xf32> to vector<1x16x16xf32>
    %45 = vector.shape_cast %43 : vector<16x16xf32> to vector<1x16x16xf32>
    %46 = tpu.concatenate %44, %45 in 0 : vector<1x16x16xf32>, vector<1x16x16xf32> -> vector<2x16x16xf32>
    %47 = arith.truncf %46 : vector<2x16x16xf32> to vector<2x16x16xbf16>
    "tpu.trace_start"() <{level = 10 : i32, message = "hqd,hkd->hqk"}> : () -> ()
    %cst_28 = arith.constant dense<0.000000e+00> : vector<2x16x16xf32>
    %48 = tpu.matmul %35, %41, %cst_28 {dimension_numbers = #tpu.dot_dimension_numbers<[2], [2], [1], [1], [0, 0, 0, 1, 1, 1], [0], [0]>} : vector<2x16x16xbf16>, vector<2x16x16xbf16>, vector<2x16x16xf32> -> vector<2x16x16xf32>
    "tpu.trace_stop"() : () -> ()
    %cst_29 = arith.constant 2.500000e-01 : f32
    %49 = vector.broadcast %cst_29 : f32 to vector<2x16x16xf32>
    %50 = arith.mulf %48, %49 : vector<2x16x16xf32>
    %51 = vector.shape_cast %7 : vector<1x16xf32> to vector<1x1x16xf32>
    %52 = vector.broadcast %51 : vector<1x1x16xf32> to vector<2x16x16xf32>
    %53 = arith.addf %50, %52 : vector<2x16x16xf32>
    %cst_30 = arith.constant dense<0xFF800000> : vector<2x16xf32>
    %54 = vector.multi_reduction <maximumf>, %53, %cst_30 [2] : vector<2x16x16xf32> to vector<2x16xf32>
    %55 = vector.shape_cast %54 : vector<2x16xf32> to vector<2x16x1xf32>
    %56 = vector.broadcast %55 : vector<2x16x1xf32> to vector<2x16x16xf32>
    %57 = arith.subf %53, %56 : vector<2x16x16xf32>
    %58 = math.exp %57 : vector<2x16x16xf32>
    %cst_31 = arith.constant dense<0.000000e+00> : vector<2x16xf32>
    %59 = vector.multi_reduction <add>, %58, %cst_31 [2] : vector<2x16x16xf32> to vector<2x16xf32>
    %60 = vector.shape_cast %59 : vector<2x16xf32> to vector<2x16x1xf32>
    %61 = tpu.reciprocal %60 {approx = true} : vector<2x16x1xf32> -> vector<2x16x1xf32>
    %62 = vector.broadcast %61 : vector<2x16x1xf32> to vector<2x16x16xf32>
    %63 = arith.mulf %58, %62 : vector<2x16x16xf32>
    %64 = arith.truncf %63 : vector<2x16x16xf32> to vector<2x16x16xbf16>
    "tpu.trace_start"() <{level = 10 : i32, message = "hqk,hkd->hqd"}> : () -> ()
    %cst_32 = arith.constant dense<0.000000e+00> : vector<2x16x16xf32>
    %65 = tpu.matmul %64, %47, %cst_32 {dimension_numbers = #tpu.dot_dimension_numbers<[2], [1], [1], [2], [0, 0, 0, 1, 1, 2], [0], [0]>} : vector<2x16x16xbf16>, vector<2x16x16xbf16>, vector<2x16x16xf32> -> vector<2x16x16xf32>
    "tpu.trace_stop"() : () -> ()
    %c0_33 = arith.constant 0 : index
    %c0_34 = arith.constant 0 : index
    %c0_35 = arith.constant 0 : index
    %66 = vector.load %arg14[%c0_33, %c0_34, %c0_35] : memref<1x32x32xbf16, #tpu.memory_space<vmem>>, vector<1x32x32xbf16>
    %67 = vector.shape_cast %66 : vector<1x32x32xbf16> to vector<32x32xbf16>
    %c0_36 = arith.constant 0 : index
    %c0_37 = arith.constant 0 : index
    %c0_38 = arith.constant 0 : index
    %68 = vector.load %arg15[%c0_36, %c0_37, %c0_38] : memref<1x1x32xf32, #tpu.memory_space<vmem>>, vector<1x1x32xf32>
    %69 = vector.shape_cast %68 : vector<1x1x32xf32> to vector<1x32xf32>
    %70 = vector.broadcast %69 : vector<1x32xf32> to vector<16x32xf32>
    %71 = arith.addf %3, %70 : vector<16x32xf32>
    %72 = vector.extract_strided_slice %65 {offsets = [0, 0, 0], sizes = [1, 16, 16], strides = [1, 1, 1]} : vector<2x16x16xf32> to vector<1x16x16xf32>
    %73 = vector.shape_cast %72 : vector<1x16x16xf32> to vector<16x16xf32>
    %74 = arith.truncf %73 : vector<16x16xf32> to vector<16x16xbf16>
    %75 = vector.extract_strided_slice %67 {offsets = [0, 0], sizes = [16, 32], strides = [1, 1]} : vector<32x32xbf16> to vector<16x32xbf16>
    %cst_39 = arith.constant dense<0.000000e+00> : vector<16x32xf32>
    %76 = tpu.matmul %74, %75, %cst_39 {dimension_numbers = #tpu.dot_dimension_numbers<[1], [0], [0], [1], [0, 0, 1, 1], [], []>} : vector<16x16xbf16>, vector<16x32xbf16>, vector<16x32xf32> -> vector<16x32xf32>
    %77 = arith.addf %71, %76 : vector<16x32xf32>
    %78 = vector.extract_strided_slice %65 {offsets = [1, 0, 0], sizes = [1, 16, 16], strides = [1, 1, 1]} : vector<2x16x16xf32> to vector<1x16x16xf32>
    %79 = vector.shape_cast %78 : vector<1x16x16xf32> to vector<16x16xf32>
    %80 = arith.truncf %79 : vector<16x16xf32> to vector<16x16xbf16>
    %81 = vector.extract_strided_slice %67 {offsets = [16, 0], sizes = [16, 32], strides = [1, 1]} : vector<32x32xbf16> to vector<16x32xbf16>
    %cst_40 = arith.constant dense<0.000000e+00> : vector<16x32xf32>
    %82 = tpu.matmul %80, %81, %cst_40 {dimension_numbers = #tpu.dot_dimension_numbers<[1], [0], [0], [1], [0, 0, 1, 1], [], []>} : vector<16x16xbf16>, vector<16x32xbf16>, vector<16x32xf32> -> vector<16x32xf32>
    %83 = arith.addf %77, %82 : vector<16x32xf32>
    %c0_41 = arith.constant 0 : index
    %c0_42 = arith.constant 0 : index
    %c0_43 = arith.constant 0 : index
    %84 = vector.load %arg16[%c0_41, %c0_42, %c0_43] : memref<1x1x32xf32, #tpu.memory_space<vmem>>, vector<1x1x32xf32>
    %85 = vector.shape_cast %84 : vector<1x1x32xf32> to vector<1x32xf32>
    %c0_44 = arith.constant 0 : index
    %c0_45 = arith.constant 0 : index
    %c0_46 = arith.constant 0 : index
    %86 = vector.load %arg17[%c0_44, %c0_45, %c0_46] : memref<1x1x32xf32, #tpu.memory_space<vmem>>, vector<1x1x32xf32>
    %87 = vector.shape_cast %86 : vector<1x1x32xf32> to vector<1x32xf32>
    %cst_47 = arith.constant dense<0.000000e+00> : vector<16xf32>
    %88 = vector.multi_reduction <add>, %83, %cst_47 [1] : vector<16x32xf32> to vector<16xf32>
    %89 = vector.shape_cast %88 : vector<16xf32> to vector<16x1xf32>
    %cst_48 = arith.constant 3.200000e+01 : f32
    %90 = vector.broadcast %cst_48 : f32 to vector<16x1xf32>
    %91 = arith.divf %89, %90 : vector<16x1xf32>
    %92 = vector.broadcast %91 : vector<16x1xf32> to vector<16x32xf32>
    %93 = arith.subf %83, %92 : vector<16x32xf32>
    %94 = arith.mulf %93, %93 : vector<16x32xf32>
    %cst_49 = arith.constant dense<0.000000e+00> : vector<16xf32>
    %95 = vector.multi_reduction <add>, %94, %cst_49 [1] : vector<16x32xf32> to vector<16xf32>
    %96 = vector.shape_cast %95 : vector<16xf32> to vector<16x1xf32>
    %cst_50 = arith.constant 3.200000e+01 : f32
    %97 = vector.broadcast %cst_50 : f32 to vector<16x1xf32>
    %98 = arith.divf %96, %97 : vector<16x1xf32>
    %99 = vector.broadcast %91 : vector<16x1xf32> to vector<16x32xf32>
    %100 = arith.subf %83, %99 : vector<16x32xf32>
    %cst_51 = arith.constant 9.99999974E-6 : f32
    %101 = vector.broadcast %cst_51 : f32 to vector<16x1xf32>
    %102 = arith.addf %98, %101 : vector<16x1xf32>
    %103 = math.rsqrt %102 : vector<16x1xf32>
    %104 = vector.broadcast %103 : vector<16x1xf32> to vector<16x32xf32>
    %105 = arith.mulf %100, %104 : vector<16x32xf32>
    %106 = vector.broadcast %85 : vector<1x32xf32> to vector<16x32xf32>
    %107 = arith.mulf %105, %106 : vector<16x32xf32>
    %108 = vector.broadcast %87 : vector<1x32xf32> to vector<16x32xf32>
    %109 = arith.addf %107, %108 : vector<16x32xf32>
    %110 = vector.broadcast %5 : vector<16x1xf32> to vector<16x32xf32>
    %111 = arith.mulf %109, %110 : vector<16x32xf32>
    %112 = arith.truncf %111 : vector<16x32xf32> to vector<16x32xbf16>
    %c0_52 = arith.constant 0 : index
    %c0_53 = arith.constant 0 : index
    %c0_54 = arith.constant 0 : index
    %113 = vector.load %arg18[%c0_52, %c0_53, %c0_54] : memref<1x32x64xbf16, #tpu.memory_space<vmem>>, vector<1x32x64xbf16>
    %114 = vector.shape_cast %113 : vector<1x32x64xbf16> to vector<32x64xbf16>
    %cst_55 = arith.constant dense<0.000000e+00> : vector<16x64xf32>
    %115 = tpu.matmul %112, %114, %cst_55 {dimension_numbers = #tpu.dot_dimension_numbers<[1], [0], [0], [1], [0, 0, 1, 1], [], []>} : vector<16x32xbf16>, vector<32x64xbf16>, vector<16x64xf32> -> vector<16x64xf32>
    %c0_56 = arith.constant 0 : index
    %c0_57 = arith.constant 0 : index
    %c0_58 = arith.constant 0 : index
    %116 = vector.load %arg19[%c0_56, %c0_57, %c0_58] : memref<1x1x64xf32, #tpu.memory_space<vmem>>, vector<1x1x64xf32>
    %117 = vector.shape_cast %116 : vector<1x1x64xf32> to vector<1x64xf32>
    %118 = vector.broadcast %117 : vector<1x64xf32> to vector<16x64xf32>
    %119 = arith.addf %115, %118 : vector<16x64xf32>
    %cst_59 = arith.constant 0.000000e+00 : f32
    %120 = vector.broadcast %cst_59 : f32 to vector<16x64xf32>
    %121 = arith.maximumf %119, %120 : vector<16x64xf32>
    %122 = arith.truncf %121 : vector<16x64xf32> to vector<16x64xbf16>
    %c0_60 = arith.constant 0 : index
    %c0_61 = arith.constant 0 : index
    %c0_62 = arith.constant 0 : index
    %123 = vector.load %arg20[%c0_60, %c0_61, %c0_62] : memref<1x64x32xbf16, #tpu.memory_space<vmem>>, vector<1x64x32xbf16>
    %124 = vector.shape_cast %123 : vector<1x64x32xbf16> to vector<64x32xbf16>
    %cst_63 = arith.constant dense<0.000000e+00> : vector<16x32xf32>
    %125 = tpu.matmul %122, %124, %cst_63 {dimension_numbers = #tpu.dot_dimension_numbers<[1], [0], [0], [1], [0, 0, 1, 1], [], []>} : vector<16x64xbf16>, vector<64x32xbf16>, vector<16x32xf32> -> vector<16x32xf32>
    %c0_64 = arith.constant 0 : index
    %c0_65 = arith.constant 0 : index
    %c0_66 = arith.constant 0 : index
    %126 = vector.load %arg21[%c0_64, %c0_65, %c0_66] : memref<1x1x32xf32, #tpu.memory_space<vmem>>, vector<1x1x32xf32>
    %127 = vector.shape_cast %126 : vector<1x1x32xf32> to vector<1x32xf32>
    %128 = vector.broadcast %127 : vector<1x32xf32> to vector<16x32xf32>
    %129 = arith.addf %125, %128 : vector<16x32xf32>
    %130 = arith.addf %129, %111 : vector<16x32xf32>
    %c0_67 = arith.constant 0 : index
    %c0_68 = arith.constant 0 : index
    %c0_69 = arith.constant 0 : index
    %131 = vector.load %arg22[%c0_67, %c0_68, %c0_69] : memref<1x1x32xf32, #tpu.memory_space<vmem>>, vector<1x1x32xf32>
    %132 = vector.shape_cast %131 : vector<1x1x32xf32> to vector<1x32xf32>
    %c0_70 = arith.constant 0 : index
    %c0_71 = arith.constant 0 : index
    %c0_72 = arith.constant 0 : index
    %133 = vector.load %arg23[%c0_70, %c0_71, %c0_72] : memref<1x1x32xf32, #tpu.memory_space<vmem>>, vector<1x1x32xf32>
    %134 = vector.shape_cast %133 : vector<1x1x32xf32> to vector<1x32xf32>
    %cst_73 = arith.constant dense<0.000000e+00> : vector<16xf32>
    %135 = vector.multi_reduction <add>, %130, %cst_73 [1] : vector<16x32xf32> to vector<16xf32>
    %136 = vector.shape_cast %135 : vector<16xf32> to vector<16x1xf32>
    %cst_74 = arith.constant 3.200000e+01 : f32
    %137 = vector.broadcast %cst_74 : f32 to vector<16x1xf32>
    %138 = arith.divf %136, %137 : vector<16x1xf32>
    %139 = vector.broadcast %138 : vector<16x1xf32> to vector<16x32xf32>
    %140 = arith.subf %130, %139 : vector<16x32xf32>
    %141 = arith.mulf %140, %140 : vector<16x32xf32>
    %cst_75 = arith.constant dense<0.000000e+00> : vector<16xf32>
    %142 = vector.multi_reduction <add>, %141, %cst_75 [1] : vector<16x32xf32> to vector<16xf32>
    %143 = vector.shape_cast %142 : vector<16xf32> to vector<16x1xf32>
    %cst_76 = arith.constant 3.200000e+01 : f32
    %144 = vector.broadcast %cst_76 : f32 to vector<16x1xf32>
    %145 = arith.divf %143, %144 : vector<16x1xf32>
    %146 = vector.broadcast %138 : vector<16x1xf32> to vector<16x32xf32>
    %147 = arith.subf %130, %146 : vector<16x32xf32>
    %cst_77 = arith.constant 9.99999974E-6 : f32
    %148 = vector.broadcast %cst_77 : f32 to vector<16x1xf32>
    %149 = arith.addf %145, %148 : vector<16x1xf32>
    %150 = math.rsqrt %149 : vector<16x1xf32>
    %151 = vector.broadcast %150 : vector<16x1xf32> to vector<16x32xf32>
    %152 = arith.mulf %147, %151 : vector<16x32xf32>
    %153 = vector.broadcast %132 : vector<1x32xf32> to vector<16x32xf32>
    %154 = arith.mulf %152, %153 : vector<16x32xf32>
    %155 = vector.broadcast %134 : vector<1x32xf32> to vector<16x32xf32>
    %156 = arith.addf %154, %155 : vector<16x32xf32>
    %157 = vector.broadcast %5 : vector<16x1xf32> to vector<16x32xf32>
    %158 = arith.mulf %156, %157 : vector<16x32xf32>
    %c0_78 = arith.constant 0 : index
    %c0_79 = arith.constant 0 : index
    %159 = vector.load %arg25[%c0_78, %c0_79] : memref<16x32xf32, #tpu.memory_space<vmem>>, vector<16x32xf32>
    tpu.vector_store %arg25[%c0_78, %c0_79], %158 {strides = array<i32>} : memref<16x32xf32, #tpu.memory_space<vmem>>, vector<16x32xf32>,
    %c1_i32 = arith.constant 1 : i32
    %160 = arith.cmpi eq, %arg1, %c1_i32 : i32
    %161 = arith.extui %160 : i1 to i32
    %c0_i32_80 = arith.constant 0 : i32
    %162 = arith.cmpi ne, %161, %c0_i32_80 : i32
    scf.if %162 {
      %c0_81 = arith.constant 0 : index
      %c0_82 = arith.constant 0 : index
      %163 = vector.load %arg25[%c0_81, %c0_82] : memref<16x32xf32, #tpu.memory_space<vmem>>, vector<16x32xf32>
      %c0_83 = arith.constant 0 : index
      %c0_84 = arith.constant 0 : index
      %c0_85 = arith.constant 0 : index
      %164 = vector.load %arg24[%c0_83, %c0_84, %c0_85] : memref<1x16x32xf32, #tpu.memory_space<vmem>>, vector<1x16x32xf32>
      %165 = vector.shape_cast %164 : vector<1x16x32xf32> to vector<16x32xf32>
      %166 = vector.shape_cast %163 : vector<16x32xf32> to vector<1x16x32xf32>
      tpu.vector_store %arg24[%c0_83, %c0_84, %c0_85], %166 {strides = array<i32>} : memref<1x16x32xf32, #tpu.memory_space<vmem>>, vector<1x16x32xf32>,
    } else {
    }
    return
  }
  func.func @transform_0(%arg0: i32, %arg1: i32) -> (i32, i32, i32) {
    %c0_i32 = arith.constant 0 : i32
    %c0_i32_0 = arith.constant 0 : i32
    %c0_i32_1 = arith.constant 0 : i32
    return %arg0, %c0_i32, %c0_i32_0 : i32, i32, i32
  }
  func.func @transform_1(%arg0: i32, %arg1: i32) -> (i32, i32, i32) {
    %c0_i32 = arith.constant 0 : i32
    %c0_i32_0 = arith.constant 0 : i32
    %c0_i32_1 = arith.constant 0 : i32
    return %arg0, %c0_i32, %c0_i32_0 : i32, i32, i32
  }
  func.func @transform_2(%arg0: i32, %arg1: i32) -> (i32, i32, i32) {
    %c0_i32 = arith.constant 0 : i32
    %c0_i32_0 = arith.constant 0 : i32
    %c0_i32_1 = arith.constant 0 : i32
    return %arg0, %c0_i32, %c0_i32_0 : i32, i32, i32
  }
  func.func @transform_3(%arg0: i32, %arg1: i32) -> (i32, i32, i32) {
    %c0_i32 = arith.constant 0 : i32
    %c0_i32_0 = arith.constant 0 : i32
    %c0_i32_1 = arith.constant 0 : i32
    return %arg0, %c0_i32, %c0_i32_0 : i32, i32, i32
  }
  func.func @transform_4(%arg0: i32, %arg1: i32) -> (i32, i32) {
    %c0_i32 = arith.constant 0 : i32
    %c0_i32_0 = arith.constant 0 : i32
    %c0_i32_1 = arith.constant 0 : i32
    return %c0_i32, %c0_i32_0 : i32, i32
  }
  func.func @transform_5(%arg0: i32, %arg1: i32) -> (i32, i32) {
    %c0_i32 = arith.constant 0 : i32
    %c0_i32_0 = arith.constant 0 : i32
    %c0_i32_1 = arith.constant 0 : i32
    return %c0_i32, %c0_i32_0 : i32, i32
  }
  func.func @transform_6(%arg0: i32, %arg1: i32) -> (i32, i32, i32) {
    %c0_i32 = arith.constant 0 : i32
    %c0_i32_0 = arith.constant 0 : i32
    %c0_i32_1 = arith.constant 0 : i32
    return %arg1, %c0_i32, %c0_i32_0 : i32, i32, i32
  }
  func.func @transform_7(%arg0: i32, %arg1: i32) -> (i32, i32, i32) {
    %c0_i32 = arith.constant 0 : i32
    %c0_i32_0 = arith.constant 0 : i32
    %c0_i32_1 = arith.constant 0 : i32
    return %arg1, %c0_i32, %c0_i32_0 : i32, i32, i32
  }
  func.func @transform_8(%arg0: i32, %arg1: i32) -> (i32, i32, i32) {
    %c0_i32 = arith.constant 0 : i32
    %c0_i32_0 = arith.constant 0 : i32
    %c0_i32_1 = arith.constant 0 : i32
    return %arg1, %c0_i32, %c0_i32_0 : i32, i32, i32
  }
  func.func @transform_9(%arg0: i32, %arg1: i32) -> (i32, i32, i32) {
    %c0_i32 = arith.constant 0 : i32
    %c0_i32_0 = arith.constant 0 : i32
    %c0_i32_1 = arith.constant 0 : i32
    return %arg1, %c0_i32, %c0_i32_0 : i32, i32, i32
  }
  func.func @transform_10(%arg0: i32, %arg1: i32) -> (i32, i32, i32) {
    %c0_i32 = arith.constant 0 : i32
    %c0_i32_0 = arith.constant 0 : i32
    %c0_i32_1 = arith.constant 0 : i32
    return %arg1, %c0_i32, %c0_i32_0 : i32, i32, i32
  }
  func.func @transform_11(%arg0: i32, %arg1: i32) -> (i32, i32, i32) {
    %c0_i32 = arith.constant 0 : i32
    %c0_i32_0 = arith.constant 0 : i32
    %c0_i32_1 = arith.constant 0 : i32
    return %arg1, %c0_i32, %c0_i32_0 : i32, i32, i32
  }
  func.func @transform_12(%arg0: i32, %arg1: i32) -> (i32, i32, i32) {
    %c0_i32 = arith.constant 0 : i32
    %c0_i32_0 = arith.constant 0 : i32
    %c0_i32_1 = arith.constant 0 : i32
    return %arg1, %c0_i32, %c0_i32_0 : i32, i32, i32
  }
  func.func @transform_13(%arg0: i32, %arg1: i32) -> (i32, i32, i32) {
    %c0_i32 = arith.constant 0 : i32
    %c0_i32_0 = arith.constant 0 : i32
    %c0_i32_1 = arith.constant 0 : i32
    return %arg1, %c0_i32, %c0_i32_0 : i32, i32, i32
  }
  func.func @transform_14(%arg0: i32, %arg1: i32) -> (i32, i32, i32) {
    %c0_i32 = arith.constant 0 : i32
    %c0_i32_0 = arith.constant 0 : i32
    %c0_i32_1 = arith.constant 0 : i32
    return %arg1, %c0_i32, %c0_i32_0 : i32, i32, i32
  }
  func.func @transform_15(%arg0: i32, %arg1: i32) -> (i32, i32, i32) {
    %c0_i32 = arith.constant 0 : i32
    %c0_i32_0 = arith.constant 0 : i32
    %c0_i32_1 = arith.constant 0 : i32
    return %arg1, %c0_i32, %c0_i32_0 : i32, i32, i32
  }
  func.func @transform_16(%arg0: i32, %arg1: i32) -> (i32, i32, i32) {
    %c0_i32 = arith.constant 0 : i32
    %c0_i32_0 = arith.constant 0 : i32
    %c0_i32_1 = arith.constant 0 : i32
    return %arg1, %c0_i32, %c0_i32_0 : i32, i32, i32
  }
  func.func @transform_17(%arg0: i32, %arg1: i32) -> (i32, i32, i32) {
    %c0_i32 = arith.constant 0 : i32
    %c0_i32_0 = arith.constant 0 : i32
    %c0_i32_1 = arith.constant 0 : i32
    return %arg1, %c0_i32, %c0_i32_0 : i32, i32, i32
  }
  func.func @transform_18(%arg0: i32, %arg1: i32) -> (i32, i32, i32) {
    %c0_i32 = arith.constant 0 : i32
    %c0_i32_0 = arith.constant 0 : i32
    %c0_i32_1 = arith.constant 0 : i32
    return %arg1, %c0_i32, %c0_i32_0 : i32, i32, i32
  }
  func.func @transform_19(%arg0: i32, %arg1: i32) -> (i32, i32, i32) {
    %c0_i32 = arith.constant 0 : i32
    %c0_i32_0 = arith.constant 0 : i32
    %c0_i32_1 = arith.constant 0 : i32
    return %arg1, %c0_i32, %c0_i32_0 : i32, i32, i32
  }
  func.func @transform_20(%arg0: i32, %arg1: i32) -> (i32, i32, i32) {
    %c0_i32 = arith.constant 0 : i32
    %c0_i32_0 = arith.constant 0 : i32
    %c0_i32_1 = arith.constant 0 : i32
    return %arg1, %c0_i32, %c0_i32_0 : i32, i32, i32
  }
  func.func @transform_21(%arg0: i32, %arg1: i32) -> (i32, i32, i32) {
    %c0_i32 = arith.constant 0 : i32
    %c0_i32_0 = arith.constant 0 : i32
    %c0_i32_1 = arith.constant 0 : i32
    return %arg1, %c0_i32, %c0_i32_0 : i32, i32, i32
  }
  func.func @transform_22(%arg0: i32, %arg1: i32) -> (i32, i32, i32) {
    %c0_i32 = arith.constant 0 : i32
    %c0_i32_0 = arith.constant 0 : i32
    %c0_i32_1 = arith.constant 0 : i32
    return %arg0, %c0_i32, %c0_i32_0 : i32, i32, i32
  }
}

</mosaic_0001>

<llo_original>
// kernel: tpu_custom_call.1
$region0: #{tpu_custom_call.1}
  #allocation0 [shape = 'u32[]', space=smem, size = 0x4, offset = 0x4, fixed_abs, tag = 'smem constant byte address 0x4 - core index']
  #allocation1 [shape = 'u32[144,128]{1,0:T(1,128)}', space=vmem, size = 0x12000, scoped, tag = 'internal scratch']
  #allocation2 [shape = 'f32[16,32]{1,0:T(8,128)}', space=vmem, size = 0x2000, scoped, tag = 'scratch operand']
  %s0 = inlined_call_operand.vmem [shape: f32[2,16,3], index: 0, kind: input, shape index: {}]
  %s1 = inlined_call_operand.vmem [shape: f32[2,16,32], index: 1, kind: input, shape index: {}]
  %s2 = inlined_call_operand.vmem [shape: f32[2,16,1], index: 2, kind: input, shape index: {}]
  %s3 = inlined_call_operand.hbm [shape: f32[2,1,16], index: 3, kind: input, shape index: {}]
  %s4 = inlined_call_operand.hbm [shape: f32[3,32], index: 4, kind: input, shape index: {}]
  %s5 = inlined_call_operand.hbm [shape: f32[1,32], index: 5, kind: input, shape index: {}]
  %s6 = inlined_call_operand.vmem [shape: bf16[2,32,32], index: 6, kind: input, shape index: {}]
  %s7 = inlined_call_operand.hbm [shape: f32[2,1,32], index: 7, kind: input, shape index: {}]
  %s8 = inlined_call_operand.vmem [shape: bf16[2,32,32], index: 8, kind: input, shape index: {}]
  %s9 = inlined_call_operand.hbm [shape: f32[2,1,32], index: 9, kind: input, shape index: {}]
  %s10 = inlined_call_operand.vmem [shape: bf16[2,32,32], index: 10, kind: input, shape index: {}]
  %s11 = inlined_call_operand.hbm [shape: f32[2,1,32], index: 11, kind: input, shape index: {}]
  %s12 = inlined_call_operand.vmem [shape: bf16[2,32,32], index: 12, kind: input, shape index: {}]
  %s13 = inlined_call_operand.hbm [shape: f32[2,1,32], index: 13, kind: input, shape index: {}]
  %s14 = inlined_call_operand.hbm [shape: f32[2,1,32], index: 14, kind: input, shape index: {}]
  %s15 = inlined_call_operand.hbm [shape: f32[2,1,32], index: 15, kind: input, shape index: {}]
  %s16 = inlined_call_operand.vmem [shape: bf16[2,32,64], index: 16, kind: input, shape index: {}]
  %s17 = inlined_call_operand.vmem [shape: f32[2,1,64], index: 17, kind: input, shape index: {}]
  %s18 = inlined_call_operand.vmem [shape: bf16[2,64,32], index: 18, kind: input, shape index: {}]
  %s19 = inlined_call_operand.vmem [shape: f32[2,1,32], index: 19, kind: input, shape index: {}]
  %s20 = inlined_call_operand.vmem [shape: f32[2,1,32], index: 20, kind: input, shape index: {}]
  %s21 = inlined_call_operand.vmem [shape: f32[2,1,32], index: 21, kind: input, shape index: {}]
  %s22 = inlined_call_operand.hbm [shape: f32[2,16,32], index: 22, kind: output, shape index: {}]
  %s23 = sld [smem:[#allocation0]]
  $region165: #{tpu_custom_call.1} parent=0
    _
  %s25 = ssub.s32 1, %s23
  %s26 = scalar_select 0, %s25, %s23
  $region1: #{tpu_custom_call.1} parent=0
    #allocation3 [shape = 'u8[1024]{0}', space=vmem, size = 0x400, scoped, tag = 'input window, operand 3']
    #allocation4 [shape = 's32[2]{0}', space=sflag, size = 0x8, scoped, tag = 'scoped memory for tpu_custom_call.1']
    #allocation5 [shape = 's32[2]{0}', space=sflag, size = 0x8, scoped, tag = 'scoped memory for tpu_custom_call.1']
    #allocation6 [shape = 'u8[2048]{0}', space=vmem, size = 0x800, scoped, tag = 'input window, operand 4, single buffered']
    #allocation7 [shape = 's32[1]{0}', space=sflag, size = 0x4, scoped, tag = 'scoped memory for tpu_custom_call.1']
    #allocation8 [shape = 'u8[512]{0}', space=vmem, size = 0x400, scoped, tag = 'input window, operand 5, single buffered']
    #allocation9 [shape = 'u8[1024]{0}', space=vmem, size = 0x400, scoped, tag = 'input window, operand 7']
    #allocation10 [shape = 's32[2]{0}', space=sflag, size = 0x8, scoped, tag = 'scoped memory for tpu_custom_call.1']
    #allocation11 [shape = 'u8[1024]{0}', space=vmem, size = 0x400, scoped, tag = 'input window, operand 9']
    #allocation12 [shape = 'u8[1024]{0}', space=vmem, size = 0x400, scoped, tag = 'input window, operand 11']
    #allocation13 [shape = 's32[2]{0}', space=sflag, size = 0x8, scoped, tag = 'scoped memory for tpu_custom_call.1']
    #allocation14 [shape = 'u8[1024]{0}', space=vmem, size = 0x400, scoped, tag = 'input window, operand 13']
    #allocation15 [shape = 'u8[1024]{0}', space=vmem, size = 0x400, scoped, tag = 'input window, operand 14']
    #allocation16 [shape = 's32[2]{0}', space=sflag, size = 0x8, scoped, tag = 'scoped memory for tpu_custom_call.1']
    #allocation17 [shape = 'u8[1024]{0}', space=vmem, size = 0x400, scoped, tag = 'input window, operand 15']
    #allocation18 [shape = 'u8[16384]{0}', space=vmem, size = 0x4000, scoped, tag = 'output window, operand 0']
    %27 = vsyncpa [#allocation4], 0
    %s28 = scalar_lea.sflag [#allocation4], 1
    %29 = vsyncpa %s28, 0
    %30 = vsyncpa [#allocation7], 0
    %31 = vsyncpa [#allocation10], 0
    %s32 = scalar_lea.sflag [#allocation10], 1
    %33 = vsyncpa %s32, 0
    %34 = vsyncpa [#allocation13], 0
    %s35 = scalar_lea.sflag [#allocation13], 1
    %36 = vsyncpa %s35, 0
    %37 = vsyncpa [#allocation16], 0
    %s38 = scalar_lea.sflag [#allocation16], 1
    %39 = vsyncpa %s38, 0
    %40 = vsyncpa [#allocation5], 0
    %s41 = scalar_lea.sflag [#allocation5], 1
    %42 = vsyncpa %s41, 0
    loop: start=0, step=1, limit=6
    $region2: #{tpu_custom_call.1} parent=1 // loop_pre_header
      _
    $region3: #{tpu_custom_call.1} parent=1 // loop_header
      %s44 = sphi 0, %s48
      %p45 = scmp.ge.s32.totalorder %s44, 6
      %s51 = sphi 0, %s63
      %s52 = sphi 0, %s59
      %s53 = sphi 0, %s51
      %s54 = sphi 0, %s52
      %s55 = sphi 0, %s53
      %s56 = sphi 0, %s54
      %s66 = sphi 0, %s68
      %s69 = sphi 0, %s66
      %s70 = sphi 0, %s69
      %s86 = sphi 0, %s70
      %s92 = sphi 0, %s94
      %s95 = sphi 0, %s92
      %s96 = sphi 0, %s95
      %s112 = sphi 0, %s96
      %s118 = sphi 0, %s120
      %s121 = sphi 0, %s118
      %s122 = sphi 0, %s121
      %s138 = sphi 0, %s122
      %s144 = sphi 0, %s146
      %s147 = sphi 0, %s144
      %s148 = sphi 0, %s147
      %s164 = sphi 0, %s148
      %s168 = sphi 0, %s168
      %s170 = sphi 0, %s168
      %s171 = sphi 0, %s170
      %s185 = sphi 0, %s171
      %s189 = sphi 0, %s189
      %s191 = sphi 0, %s189
      %s192 = sphi 0, %s191
      %s206 = sphi 0, %s192
      %s212 = sphi 0, %s214
      %s215 = sphi 0, %s212
      %s216 = sphi 0, %s215
      %s232 = sphi 0, %s216
      %s238 = sphi 0, %s240
      %s241 = sphi 0, %s238
      %s242 = sphi 0, %s241
      %s258 = sphi 0, %s242
      %s264 = sphi 0, %s266
      %s267 = sphi 0, %s264
      %s268 = sphi 0, %s267
      %s284 = sphi 0, %s268
      %s290 = sphi 0, %s292
      %s293 = sphi 0, %s290
      %s294 = sphi 0, %s293
      %s310 = sphi 0, %s294
      %s316 = sphi 0, %s318
      %s319 = sphi 0, %s316
      %s320 = sphi 0, %s319
      %s336 = sphi 0, %s320
      %s342 = sphi 0, %s344
      %s345 = sphi 0, %s342
      %s346 = sphi 0, %s345
      %s362 = sphi 0, %s346
      %s368 = sphi 0, %s370
      %s371 = sphi 0, %s368
      %s372 = sphi 0, %s371
      %s388 = sphi 0, %s372
      %s394 = sphi 0, %s396
      %s397 = sphi 0, %s394
      %s398 = sphi 0, %s397
      %s414 = sphi 0, %s398
      %s420 = sphi 0, %s422
      %s423 = sphi 0, %s420
      %s424 = sphi 0, %s423
      %s440 = sphi 0, %s424
      %s446 = sphi 0, %s448
      %s449 = sphi 0, %s446
      %s450 = sphi 0, %s449
      %s466 = sphi 0, %s450
      %s472 = sphi 0, %s474
      %s475 = sphi 0, %s472
      %s476 = sphi 0, %s475
      %s492 = sphi 0, %s476
      %s498 = sphi 0, %s500
      %s501 = sphi 0, %s498
      %s502 = sphi 0, %s501
      %s518 = sphi 0, %s502
      %s524 = sphi 0, %s526
      %s527 = sphi 0, %s524
      %s528 = sphi 0, %s527
      %s544 = sphi 0, %s528
      %s550 = sphi 0, %s552
      %s553 = sphi 0, %s550
      %s554 = sphi 0, %s553
      %s570 = sphi 0, %s554
      %s576 = sphi 0, %s578
      %s579 = sphi 0, %s576
      %s580 = sphi 0, %s579
      %s596 = sphi 0, %s580
      %s602 = sphi 0, %s604
      %s605 = sphi 0, %s602
      %s606 = sphi 0, %s605
      %s622 = sphi 0, %s606
      %s628 = sphi 0, %s630
      %s631 = sphi 0, %s628
      %s632 = sphi 0, %s631
      %s648 = sphi 0, %s632
    $region4: #{tpu_custom_call.1} parent=1 // loop_header_branch
      %47 = sbr.rel (%p45) target = $region8
    $region5: #{tpu_custom_call.1} parent=1 // loop_body
      %s49 = ssub.s32 %s44, 1
      %s50 = ssub.s32 %s44, 2
      %s57 = sadd.s32 1, %s52
      %p58 = scmp.ge.s32.totalorder %s57, 2
      %s59 = scalar_select %p58, 0, %s57
      %s60 = sadd.s32 1, %s51
      %s61 = scalar_select %p58, %s60, %s51
      %p62 = scmp.ge.s32.totalorder %s61, 2
      %s63 = scalar_select %p62, 0, %s61
      %s64 = ssub.s32 %s51, %s63
      %p65 = scmp.eq.s32.totalorder %s64, 0
      %s67 = sadd.s32 %s66, 1
      %s68 = scalar_select %p65, %s66, %s67
      %p71 = pneg %p65
      %p72 = scmp.eq.s32.totalorder %s44, 3
      %p73 = por %p71, %p72
      %p74 = scmp.ne.s32.totalorder %s66, %s69
      %p75 = scmp.eq.s32.totalorder %s44, 0
      %p76 = por %p74, %p75
      %p77 = scmp.ne.s32.totalorder %s66, %s69
      %p78 = scmp.eq.s32.totalorder %s49, 3
      %p79 = por %p77, %p78
      %p80 = scmp.ne.s32.totalorder %s69, %s70
      %p81 = scmp.eq.s32.totalorder %s49, 0
      %p82 = por %p80, %p81
      %p83 = scmp.ne.s32.totalorder %s69, %s70
      %p84 = scmp.eq.s32.totalorder %s50, 3
      %p85 = por %p83, %p84
      %p87 = scmp.ne.s32.totalorder %s70, %s86
      %p88 = scmp.eq.s32.totalorder %s50, 0
      %p89 = por %p87, %p88
      %s90 = ssub.s32 %s51, %s63
      %p91 = scmp.eq.s32.totalorder %s90, 0
      %s93 = sadd.s32 %s92, 1
      %s94 = scalar_select %p91, %s92, %s93
      %p97 = pneg %p91
      %p98 = scmp.eq.s32.totalorder %s44, 3
      %p99 = por %p97, %p98
      %p100 = scmp.ne.s32.totalorder %s92, %s95
      %p101 = scmp.eq.s32.totalorder %s44, 0
      %p102 = por %p100, %p101
      %p103 = scmp.ne.s32.totalorder %s92, %s95
      %p104 = scmp.eq.s32.totalorder %s49, 3
      %p105 = por %p103, %p104
      %p106 = scmp.ne.s32.totalorder %s95, %s96
      %p107 = scmp.eq.s32.totalorder %s49, 0
      %p108 = por %p106, %p107
      %p109 = scmp.ne.s32.totalorder %s95, %s96
      %p110 = scmp.eq.s32.totalorder %s50, 3
      %p111 = por %p109, %p110
      %p113 = scmp.ne.s32.totalorder %s96, %s112
      %p114 = scmp.eq.s32.totalorder %s50, 0
      %p115 = por %p113, %p114
      %s116 = ssub.s32 %s51, %s63
      %p117 = scmp.eq.s32.totalorder %s116, 0
      %s119 = sadd.s32 %s118, 1
      %s120 = scalar_select %p117, %s118, %s119
      %p123 = pneg %p117
      %p124 = scmp.eq.s32.totalorder %s44, 3
      %p125 = por %p123, %p124
      %p126 = scmp.ne.s32.totalorder %s118, %s121
      %p127 = scmp.eq.s32.totalorder %s44, 0
      %p128 = por %p126, %p127
      %p129 = scmp.ne.s32.totalorder %s118, %s121
      %p130 = scmp.eq.s32.totalorder %s49, 3
      %p131 = por %p129, %p130
      %p132 = scmp.ne.s32.totalorder %s121, %s122
      %p133 = scmp.eq.s32.totalorder %s49, 0
      %p134 = por %p132, %p133
      %p135 = scmp.ne.s32.totalorder %s121, %s122
      %p136 = scmp.eq.s32.totalorder %s50, 3
      %p137 = por %p135, %p136
      %p139 = scmp.ne.s32.totalorder %s122, %s138
      %p140 = scmp.eq.s32.totalorder %s50, 0
      %p141 = por %p139, %p140
      %s142 = ssub.s32 %s51, %s63
      %p143 = scmp.eq.s32.totalorder %s142, 0
      %s145 = sadd.s32 %s144, 1
      %s146 = scalar_select %p143, %s144, %s145
      %p149 = pneg %p143
      %p150 = scmp.eq.s32.totalorder %s44, 3
      %p151 = por %p149, %p150
      %p152 = scmp.ne.s32.totalorder %s144, %s147
      %p153 = scmp.eq.s32.totalorder %s44, 0
      %p154 = por %p152, %p153
      %p155 = scmp.ne.s32.totalorder %s144, %s147
      %p156 = scmp.eq.s32.totalorder %s49, 3
      %p157 = por %p155, %p156
      %p158 = scmp.ne.s32.totalorder %s147, %s148
      %p159 = scmp.eq.s32.totalorder %s49, 0
      %p160 = por %p158, %p159
      %p161 = scmp.ne.s32.totalorder %s147, %s148
      %p162 = scmp.eq.s32.totalorder %s50, 3
      %p163 = por %p161, %p162
      %p165 = scmp.ne.s32.totalorder %s148, %s164
      %p166 = scmp.eq.s32.totalorder %s50, 0
      %p167 = por %p165, %p166
      %s169 = sadd.s32 %s168, 1
      %p172 = scmp.eq.s32.totalorder %s44, 3
      %p173 = scmp.ne.s32.totalorder %s168, %s170
      %p174 = scmp.eq.s32.totalorder %s44, 0
      %p175 = por %p173, %p174
      %p176 = scmp.ne.s32.totalorder %s168, %s170
      %p177 = scmp.eq.s32.totalorder %s49, 3
      %p178 = por %p176, %p177
      %p179 = scmp.ne.s32.totalorder %s170, %s171
      %p180 = scmp.eq.s32.totalorder %s49, 0
      %p181 = por %p179, %p180
      %p182 = scmp.ne.s32.totalorder %s170, %s171
      %p183 = scmp.eq.s32.totalorder %s50, 3
      %p184 = por %p182, %p183
      %p186 = scmp.ne.s32.totalorder %s171, %s185
      %p187 = scmp.eq.s32.totalorder %s50, 0
      %p188 = por %p186, %p187
      %s190 = sadd.s32 %s189, 1
      %p193 = scmp.eq.s32.totalorder %s44, 3
      %p194 = scmp.ne.s32.totalorder %s189, %s191
      %p195 = scmp.eq.s32.totalorder %s44, 0
      %p196 = por %p194, %p195
      %p197 = scmp.ne.s32.totalorder %s189, %s191
      %p198 = scmp.eq.s32.totalorder %s49, 3
      %p199 = por %p197, %p198
      %p200 = scmp.ne.s32.totalorder %s191, %s192
      %p201 = scmp.eq.s32.totalorder %s49, 0
      %p202 = por %p200, %p201
      %p203 = scmp.ne.s32.totalorder %s191, %s192
      %p204 = scmp.eq.s32.totalorder %s50, 3
      %p205 = por %p203, %p204
      %p207 = scmp.ne.s32.totalorder %s192, %s206
      %p208 = scmp.eq.s32.totalorder %s50, 0
      %p209 = por %p207, %p208
      %s210 = ssub.s32 %s52, %s59
      %p211 = scmp.eq.s32.totalorder %s210, 0
      %s213 = sadd.s32 %s212, 1
      %s214 = scalar_select %p211, %s212, %s213
      %p217 = pneg %p211
      %p218 = scmp.eq.s32.totalorder %s44, 3
      %p219 = por %p217, %p218
      %p220 = scmp.ne.s32.totalorder %s212, %s215
      %p221 = scmp.eq.s32.totalorder %s44, 0
      %p222 = por %p220, %p221
      %p223 = scmp.ne.s32.totalorder %s212, %s215
      %p224 = scmp.eq.s32.totalorder %s49, 3
      %p225 = por %p223, %p224
      %p226 = scmp.ne.s32.totalorder %s215, %s216
      %p227 = scmp.eq.s32.totalorder %s49, 0
      %p228 = por %p226, %p227
      %p229 = scmp.ne.s32.totalorder %s215, %s216
      %p230 = scmp.eq.s32.totalorder %s50, 3
      %p231 = por %p229, %p230
      %p233 = scmp.ne.s32.totalorder %s216, %s232
      %p234 = scmp.eq.s32.totalorder %s50, 0
      %p235 = por %p233, %p234
      %s236 = ssub.s32 %s52, %s59
      %p237 = scmp.eq.s32.totalorder %s236, 0
      %s239 = sadd.s32 %s238, 1
      %s240 = scalar_select %p237, %s238, %s239
      %p243 = pneg %p237
      %p244 = scmp.eq.s32.totalorder %s44, 3
      %p245 = por %p243, %p244
      %p246 = scmp.ne.s32.totalorder %s238, %s241
      %p247 = scmp.eq.s32.totalorder %s44, 0
      %p248 = por %p246, %p247
      %p249 = scmp.ne.s32.totalorder %s238, %s241
      %p250 = scmp.eq.s32.totalorder %s49, 3
      %p251 = por %p249, %p250
      %p252 = scmp.ne.s32.totalorder %s241, %s242
      %p253 = scmp.eq.s32.totalorder %s49, 0
      %p254 = por %p252, %p253
      %p255 = scmp.ne.s32.totalorder %s241, %s242
      %p256 = scmp.eq.s32.totalorder %s50, 3
      %p257 = por %p255, %p256
      %p259 = scmp.ne.s32.totalorder %s242, %s258
      %p260 = scmp.eq.s32.totalorder %s50, 0
      %p261 = por %p259, %p260
      %s262 = ssub.s32 %s52, %s59
      %p263 = scmp.eq.s32.totalorder %s262, 0
      %s265 = sadd.s32 %s264, 1
      %s266 = scalar_select %p263, %s264, %s265
      %p269 = pneg %p263
      %p270 = scmp.eq.s32.totalorder %s44, 3
      %p271 = por %p269, %p270
      %p272 = scmp.ne.s32.totalorder %s264, %s267
      %p273 = scmp.eq.s32.totalorder %s44, 0
      %p274 = por %p272, %p273
      %p275 = scmp.ne.s32.totalorder %s264, %s267
      %p276 = scmp.eq.s32.totalorder %s49, 3
      %p277 = por %p275, %p276
      %p278 = scmp.ne.s32.totalorder %s267, %s268
      %p279 = scmp.eq.s32.totalorder %s49, 0
      %p280 = por %p278, %p279
      %p281 = scmp.ne.s32.totalorder %s267, %s268
      %p282 = scmp.eq.s32.totalorder %s50, 3
      %p283 = por %p281, %p282
      %p285 = scmp.ne.s32.totalorder %s268, %s284
      %p286 = scmp.eq.s32.totalorder %s50, 0
      %p287 = por %p285, %p286
      %s288 = ssub.s32 %s52, %s59
      %p289 = scmp.eq.s32.totalorder %s288, 0
      %s291 = sadd.s32 %s290, 1
      %s292 = scalar_select %p289, %s290, %s291
      %p295 = pneg %p289
      %p296 = scmp.eq.s32.totalorder %s44, 3
      %p297 = por %p295, %p296
      %p298 = scmp.ne.s32.totalorder %s290, %s293
      %p299 = scmp.eq.s32.totalorder %s44, 0
      %p300 = por %p298, %p299
      %p301 = scmp.ne.s32.totalorder %s290, %s293
      %p302 = scmp.eq.s32.totalorder %s49, 3
      %p303 = por %p301, %p302
      %p304 = scmp.ne.s32.totalorder %s293, %s294
      %p305 = scmp.eq.s32.totalorder %s49, 0
      %p306 = por %p304, %p305
      %p307 = scmp.ne.s32.totalorder %s293, %s294
      %p308 = scmp.eq.s32.totalorder %s50, 3
      %p309 = por %p307, %p308
      %p311 = scmp.ne.s32.totalorder %s294, %s310
      %p312 = scmp.eq.s32.totalorder %s50, 0
      %p313 = por %p311, %p312
      %s314 = ssub.s32 %s52, %s59
      %p315 = scmp.eq.s32.totalorder %s314, 0
      %s317 = sadd.s32 %s316, 1
      %s318 = scalar_select %p315, %s316, %s317
      %p321 = pneg %p315
      %p322 = scmp.eq.s32.totalorder %s44, 3
      %p323 = por %p321, %p322
      %p324 = scmp.ne.s32.totalorder %s316, %s319
      %p325 = scmp.eq.s32.totalorder %s44, 0
      %p326 = por %p324, %p325
      %p327 = scmp.ne.s32.totalorder %s316, %s319
      %p328 = scmp.eq.s32.totalorder %s49, 3
      %p329 = por %p327, %p328
      %p330 = scmp.ne.s32.totalorder %s319, %s320
      %p331 = scmp.eq.s32.totalorder %s49, 0
      %p332 = por %p330, %p331
      %p333 = scmp.ne.s32.totalorder %s319, %s320
      %p334 = scmp.eq.s32.totalorder %s50, 3
      %p335 = por %p333, %p334
      %p337 = scmp.ne.s32.totalorder %s320, %s336
      %p338 = scmp.eq.s32.totalorder %s50, 0
      %p339 = por %p337, %p338
      %s340 = ssub.s32 %s52, %s59
      %p341 = scmp.eq.s32.totalorder %s340, 0
      %s343 = sadd.s32 %s342, 1
      %s344 = scalar_select %p341, %s342, %s343
      %p347 = pneg %p341
      %p348 = scmp.eq.s32.totalorder %s44, 3
      %p349 = por %p347, %p348
      %p350 = scmp.ne.s32.totalorder %s342, %s345
      %p351 = scmp.eq.s32.totalorder %s44, 0
      %p352 = por %p350, %p351
      %p353 = scmp.ne.s32.totalorder %s342, %s345
      %p354 = scmp.eq.s32.totalorder %s49, 3
      %p355 = por %p353, %p354
      %p356 = scmp.ne.s32.totalorder %s345, %s346
      %p357 = scmp.eq.s32.totalorder %s49, 0
      %p358 = por %p356, %p357
      %p359 = scmp.ne.s32.totalorder %s345, %s346
      %p360 = scmp.eq.s32.totalorder %s50, 3
      %p361 = por %p359, %p360
      %p363 = scmp.ne.s32.totalorder %s346, %s362
      %p364 = scmp.eq.s32.totalorder %s50, 0
      %p365 = por %p363, %p364
      %s366 = ssub.s32 %s52, %s59
      %p367 = scmp.eq.s32.totalorder %s366, 0
      %s369 = sadd.s32 %s368, 1
      %s370 = scalar_select %p367, %s368, %s369
      %p373 = pneg %p367
      %p374 = scmp.eq.s32.totalorder %s44, 3
      %p375 = por %p373, %p374
      %p376 = scmp.ne.s32.totalorder %s368, %s371
      %p377 = scmp.eq.s32.totalorder %s44, 0
      %p378 = por %p376, %p377
      %p379 = scmp.ne.s32.totalorder %s368, %s371
      %p380 = scmp.eq.s32.totalorder %s49, 3
      %p381 = por %p379, %p380
      %p382 = scmp.ne.s32.totalorder %s371, %s372
      %p383 = scmp.eq.s32.totalorder %s49, 0
      %p384 = por %p382, %p383
      %p385 = scmp.ne.s32.totalorder %s371, %s372
      %p386 = scmp.eq.s32.totalorder %s50, 3
      %p387 = por %p385, %p386
      %p389 = scmp.ne.s32.totalorder %s372, %s388
      %p390 = scmp.eq.s32.totalorder %s50, 0
      %p391 = por %p389, %p390
      %s392 = ssub.s32 %s52, %s59
      %p393 = scmp.eq.s32.totalorder %s392, 0
      %s395 = sadd.s32 %s394, 1
      %s396 = scalar_select %p393, %s394, %s395
      %p399 = pneg %p393
      %p400 = scmp.eq.s32.totalorder %s44, 3
      %p401 = por %p399, %p400
      %p402 = scmp.ne.s32.totalorder %s394, %s397
      %p403 = scmp.eq.s32.totalorder %s44, 0
      %p404 = por %p402, %p403
      %p405 = scmp.ne.s32.totalorder %s394, %s397
      %p406 = scmp.eq.s32.totalorder %s49, 3
      %p407 = por %p405, %p406
      %p408 = scmp.ne.s32.totalorder %s397, %s398
      %p409 = scmp.eq.s32.totalorder %s49, 0
      %p410 = por %p408, %p409
      %p411 = scmp.ne.s32.totalorder %s397, %s398
      %p412 = scmp.eq.s32.totalorder %s50, 3
      %p413 = por %p411, %p412
      %p415 = scmp.ne.s32.totalorder %s398, %s414
      %p416 = scmp.eq.s32.totalorder %s50, 0
      %p417 = por %p415, %p416
      %s418 = ssub.s32 %s52, %s59
      %p419 = scmp.eq.s32.totalorder %s418, 0
      %s421 = sadd.s32 %s420, 1
      %s422 = scalar_select %p419, %s420, %s421
      %p425 = pneg %p419
      %p426 = scmp.eq.s32.totalorder %s44, 3
      %p427 = por %p425, %p426
      %p428 = scmp.ne.s32.totalorder %s420, %s423
      %p429 = scmp.eq.s32.totalorder %s44, 0
      %p430 = por %p428, %p429
      %p431 = scmp.ne.s32.totalorder %s420, %s423
      %p432 = scmp.eq.s32.totalorder %s49, 3
      %p433 = por %p431, %p432
      %p434 = scmp.ne.s32.totalorder %s423, %s424
      %p435 = scmp.eq.s32.totalorder %s49, 0
      %p436 = por %p434, %p435
      %p437 = scmp.ne.s32.totalorder %s423, %s424
      %p438 = scmp.eq.s32.totalorder %s50, 3
      %p439 = por %p437, %p438
      %p441 = scmp.ne.s32.totalorder %s424, %s440
      %p442 = scmp.eq.s32.totalorder %s50, 0
      %p443 = por %p441, %p442
      %s444 = ssub.s32 %s52, %s59
      %p445 = scmp.eq.s32.totalorder %s444, 0
      %s447 = sadd.s32 %s446, 1
      %s448 = scalar_select %p445, %s446, %s447
      %p451 = pneg %p445
      %p452 = scmp.eq.s32.totalorder %s44, 3
      %p453 = por %p451, %p452
      %p454 = scmp.ne.s32.totalorder %s446, %s449
      %p455 = scmp.eq.s32.totalorder %s44, 0
      %p456 = por %p454, %p455
      %p457 = scmp.ne.s32.totalorder %s446, %s449
      %p458 = scmp.eq.s32.totalorder %s49, 3
      %p459 = por %p457, %p458
      %p460 = scmp.ne.s32.totalorder %s449, %s450
      %p461 = scmp.eq.s32.totalorder %s49, 0
      %p462 = por %p460, %p461
      %p463 = scmp.ne.s32.totalorder %s449, %s450
      %p464 = scmp.eq.s32.totalorder %s50, 3
      %p465 = por %p463, %p464
      %p467 = scmp.ne.s32.totalorder %s450, %s466
      %p468 = scmp.eq.s32.totalorder %s50, 0
      %p469 = por %p467, %p468
      %s470 = ssub.s32 %s52, %s59
      %p471 = scmp.eq.s32.totalorder %s470, 0
      %s473 = sadd.s32 %s472, 1
      %s474 = scalar_select %p471, %s472, %s473
      %p477 = pneg %p471
      %p478 = scmp.eq.s32.totalorder %s44, 3
      %p479 = por %p477, %p478
      %p480 = scmp.ne.s32.totalorder %s472, %s475
      %p481 = scmp.eq.s32.totalorder %s44, 0
      %p482 = por %p480, %p481
      %p483 = scmp.ne.s32.totalorder %s472, %s475
      %p484 = scmp.eq.s32.totalorder %s49, 3
      %p485 = por %p483, %p484
      %p486 = scmp.ne.s32.totalorder %s475, %s476
      %p487 = scmp.eq.s32.totalorder %s49, 0
      %p488 = por %p486, %p487
      %p489 = scmp.ne.s32.totalorder %s475, %s476
      %p490 = scmp.eq.s32.totalorder %s50, 3
      %p491 = por %p489, %p490
      %p493 = scmp.ne.s32.totalorder %s476, %s492
      %p494 = scmp.eq.s32.totalorder %s50, 0
      %p495 = por %p493, %p494
      %s496 = ssub.s32 %s52, %s59
      %p497 = scmp.eq.s32.totalorder %s496, 0
      %s499 = sadd.s32 %s498, 1
      %s500 = scalar_select %p497, %s498, %s499
      %p503 = pneg %p497
      %p504 = scmp.eq.s32.totalorder %s44, 3
      %p505 = por %p503, %p504
      %p506 = scmp.ne.s32.totalorder %s498, %s501
      %p507 = scmp.eq.s32.totalorder %s44, 0
      %p508 = por %p506, %p507
      %p509 = scmp.ne.s32.totalorder %s498, %s501
      %p510 = scmp.eq.s32.totalorder %s49, 3
      %p511 = por %p509, %p510
      %p512 = scmp.ne.s32.totalorder %s501, %s502
      %p513 = scmp.eq.s32.totalorder %s49, 0
      %p514 = por %p512, %p513
      %p515 = scmp.ne.s32.totalorder %s501, %s502
      %p516 = scmp.eq.s32.totalorder %s50, 3
      %p517 = por %p515, %p516
      %p519 = scmp.ne.s32.totalorder %s502, %s518
      %p520 = scmp.eq.s32.totalorder %s50, 0
      %p521 = por %p519, %p520
      %s522 = ssub.s32 %s52, %s59
      %p523 = scmp.eq.s32.totalorder %s522, 0
      %s525 = sadd.s32 %s524, 1
      %s526 = scalar_select %p523, %s524, %s525
      %p529 = pneg %p523
      %p530 = scmp.eq.s32.totalorder %s44, 3
      %p531 = por %p529, %p530
      %p532 = scmp.ne.s32.totalorder %s524, %s527
      %p533 = scmp.eq.s32.totalorder %s44, 0
      %p534 = por %p532, %p533
      %p535 = scmp.ne.s32.totalorder %s524, %s527
      %p536 = scmp.eq.s32.totalorder %s49, 3
      %p537 = por %p535, %p536
      %p538 = scmp.ne.s32.totalorder %s527, %s528
      %p539 = scmp.eq.s32.totalorder %s49, 0
      %p540 = por %p538, %p539
      %p541 = scmp.ne.s32.totalorder %s527, %s528
      %p542 = scmp.eq.s32.totalorder %s50, 3
      %p543 = por %p541, %p542
      %p545 = scmp.ne.s32.totalorder %s528, %s544
      %p546 = scmp.eq.s32.totalorder %s50, 0
      %p547 = por %p545, %p546
      %s548 = ssub.s32 %s52, %s59
      %p549 = scmp.eq.s32.totalorder %s548, 0
      %s551 = sadd.s32 %s550, 1
      %s552 = scalar_select %p549, %s550, %s551
      %p555 = pneg %p549
      %p556 = scmp.eq.s32.totalorder %s44, 3
      %p557 = por %p555, %p556
      %p558 = scmp.ne.s32.totalorder %s550, %s553
      %p559 = scmp.eq.s32.totalorder %s44, 0
      %p560 = por %p558, %p559
      %p561 = scmp.ne.s32.totalorder %s550, %s553
      %p562 = scmp.eq.s32.totalorder %s49, 3
      %p563 = por %p561, %p562
      %p564 = scmp.ne.s32.totalorder %s553, %s554
      %p565 = scmp.eq.s32.totalorder %s49, 0
      %p566 = por %p564, %p565
      %p567 = scmp.ne.s32.totalorder %s553, %s554
      %p568 = scmp.eq.s32.totalorder %s50, 3
      %p569 = por %p567, %p568
      %p571 = scmp.ne.s32.totalorder %s554, %s570
      %p572 = scmp.eq.s32.totalorder %s50, 0
      %p573 = por %p571, %p572
      %s574 = ssub.s32 %s52, %s59
      %p575 = scmp.eq.s32.totalorder %s574, 0
      %s577 = sadd.s32 %s576, 1
      %s578 = scalar_select %p575, %s576, %s577
      %p581 = pneg %p575
      %p582 = scmp.eq.s32.totalorder %s44, 3
      %p583 = por %p581, %p582
      %p584 = scmp.ne.s32.totalorder %s576, %s579
      %p585 = scmp.eq.s32.totalorder %s44, 0
      %p586 = por %p584, %p585
      %p587 = scmp.ne.s32.totalorder %s576, %s579
      %p588 = scmp.eq.s32.totalorder %s49, 3
      %p589 = por %p587, %p588
      %p590 = scmp.ne.s32.totalorder %s579, %s580
      %p591 = scmp.eq.s32.totalorder %s49, 0
      %p592 = por %p590, %p591
      %p593 = scmp.ne.s32.totalorder %s579, %s580
      %p594 = scmp.eq.s32.totalorder %s50, 3
      %p595 = por %p593, %p594
      %p597 = scmp.ne.s32.totalorder %s580, %s596
      %p598 = scmp.eq.s32.totalorder %s50, 0
      %p599 = por %p597, %p598
      %s600 = ssub.s32 %s52, %s59
      %p601 = scmp.eq.s32.totalorder %s600, 0
      %s603 = sadd.s32 %s602, 1
      %s604 = scalar_select %p601, %s602, %s603
      %p607 = pneg %p601
      %p608 = scmp.eq.s32.totalorder %s44, 3
      %p609 = por %p607, %p608
      %p610 = scmp.ne.s32.totalorder %s602, %s605
      %p611 = scmp.eq.s32.totalorder %s44, 0
      %p612 = por %p610, %p611
      %p613 = scmp.ne.s32.totalorder %s602, %s605
      %p614 = scmp.eq.s32.totalorder %s49, 3
      %p615 = por %p613, %p614
      %p616 = scmp.ne.s32.totalorder %s605, %s606
      %p617 = scmp.eq.s32.totalorder %s49, 0
      %p618 = por %p616, %p617
      %p619 = scmp.ne.s32.totalorder %s605, %s606
      %p620 = scmp.eq.s32.totalorder %s50, 3
      %p621 = por %p619, %p620
      %p623 = scmp.ne.s32.totalorder %s606, %s622
      %p624 = scmp.eq.s32.totalorder %s50, 0
      %p625 = por %p623, %p624
      %s626 = ssub.s32 %s51, %s63
      %p627 = scmp.eq.s32.totalorder %s626, 0
      %s629 = sadd.s32 %s628, 1
      %s630 = scalar_select %p627, %s628, %s629
      %p633 = pneg %p627
      %p634 = scmp.eq.s32.totalorder %s44, 3
      %p635 = por %p633, %p634
      %p636 = scmp.ne.s32.totalorder %s628, %s631
      %p637 = scmp.eq.s32.totalorder %s44, 0
      %p638 = por %p636, %p637
      %p639 = scmp.ne.s32.totalorder %s628, %s631
      %p640 = scmp.eq.s32.totalorder %s49, 3
      %p641 = por %p639, %p640
      %p642 = scmp.ne.s32.totalorder %s631, %s632
      %p643 = scmp.eq.s32.totalorder %s49, 0
      %p644 = por %p642, %p643
      %p645 = scmp.ne.s32.totalorder %s631, %s632
      %p646 = scmp.eq.s32.totalorder %s50, 3
      %p647 = por %p645, %p646
      %p649 = scmp.ne.s32.totalorder %s632, %s648
      %p650 = scmp.eq.s32.totalorder %s50, 0
      %p651 = por %p649, %p650
      %p652 = scmp.le.s32.totalorder 1, %s44
      %p653 = scmp.lt.s32.totalorder %s44, 5
      %p654 = pnand %p652, %p653
      %p655 = pneg %p654
      // Predicated region
      $region9: #{tpu_custom_call.1} parent=5 // pred_check
        _
      $region10: #{tpu_custom_call.1} parent=5 // pred_check_branch
        %657 = sbr.rel (%p654) target = $region12
      $region11: #{tpu_custom_call.1} parent=5 // pred_region
        %s658 = ssub.s32 %s44, 1
        // Predicated region
        $region13: #{tpu_custom_call.1} parent=11 // pred_check
          %p659 = pneg %p181
        $region14: #{tpu_custom_call.1} parent=11 // pred_check_branch
          %661 = sbr.rel (%p659) target = $region16
        $region15: #{tpu_custom_call.1} parent=11 // pred_region
          %s663 = ssub.s32 64, 64
          %664 = vsyncadd [#allocation7], %s663
          %s666 = sshll.u32 [#allocation6], 4
          %s667 = int_to_ptr.vmem [resolvable:$true] %s666
          %669 = dma.hbm_to_vmem [thread:$0]  %s4, 64, %s667, [#allocation7]
        $region16: #{tpu_custom_call.1} parent=11 // pred_fallthru
          _
        // Predicated region
        $region17: #{tpu_custom_call.1} parent=11 // pred_check
          %p670 = pneg %p202
        $region18: #{tpu_custom_call.1} parent=11 // pred_check_branch
          %672 = sbr.rel (%p670) target = $region20
        $region19: #{tpu_custom_call.1} parent=11 // pred_region
          %s674 = ssub.s32 16, 16
          %675 = vsyncadd [#allocation7], %s674
          %s677 = sshll.u32 [#allocation8], 4
          %s678 = int_to_ptr.vmem [resolvable:$true] %s677
          %680 = dma.hbm_to_vmem [thread:$0]  %s5, 16, %s678, [#allocation7]
        $region20: #{tpu_custom_call.1} parent=11 // pred_fallthru
          _
      $region12: #{tpu_custom_call.1} parent=5 // pred_fallthru
        _
      %p681 = scmp.lt.s32.totalorder %s44, 4
      // Predicated region
      $region21: #{tpu_custom_call.1} parent=5 // pred_check
        %p682 = pneg %p681
      $region22: #{tpu_custom_call.1} parent=5 // pred_check_branch
        %684 = sbr.rel (%p682) target = $region24
      $region23: #{tpu_custom_call.1} parent=5 // pred_region
        // Predicated region
        $region25: #{tpu_custom_call.1} parent=23 // pred_check
          %p685 = pneg %p76
        $region26: #{tpu_custom_call.1} parent=23 // pred_check_branch
          %687 = sbr.rel (%p685) target = $region28
        $region27: #{tpu_custom_call.1} parent=23 // pred_region
          %p688 = scmp.lt.s32.totalorder %s51, 1
          %s689 = scalar_select %p688, %s51, 1
          %s690 = smul.addr %s689, 2
          %s691 = smul.addr %s690, 8
          %s692 = scalar_lea.vmem %s0, %s691
        $region28: #{tpu_custom_call.1} parent=23 // pred_fallthru
          _
        // Predicated region
        $region29: #{tpu_custom_call.1} parent=23 // pred_check
          %p693 = pneg %p102
        $region30: #{tpu_custom_call.1} parent=23 // pred_check_branch
          %695 = sbr.rel (%p693) target = $region32
        $region31: #{tpu_custom_call.1} parent=23 // pred_region
          %p696 = scmp.lt.s32.totalorder %s51, 1
          %s697 = scalar_select %p696, %s51, 1
          %s698 = smul.addr %s697, 2
          %s699 = smul.addr %s698, 8
          %s700 = scalar_lea.vmem %s1, %s699
        $region32: #{tpu_custom_call.1} parent=23 // pred_fallthru
          _
        // Predicated region
        $region33: #{tpu_custom_call.1} parent=23 // pred_check
          %p701 = pneg %p128
        $region34: #{tpu_custom_call.1} parent=23 // pred_check_branch
          %703 = sbr.rel (%p701) target = $region36
        $region35: #{tpu_custom_call.1} parent=23 // pred_region
          %p704 = scmp.lt.s32.totalorder %s51, 1
          %s705 = scalar_select %p704, %s51, 1
          %s706 = smul.addr %s705, 2
          %s707 = smul.addr %s706, 8
          %s708 = scalar_lea.vmem %s2, %s707
        $region36: #{tpu_custom_call.1} parent=23 // pred_fallthru
          _
        // Predicated region
        $region37: #{tpu_custom_call.1} parent=23 // pred_check
          %p709 = pneg %p154
        $region38: #{tpu_custom_call.1} parent=23 // pred_check_branch
          %711 = sbr.rel (%p709) target = $region40
        $region39: #{tpu_custom_call.1} parent=23 // pred_region
          %s712 = sand.u32 %s144, 1
          %s713 = scalar_lea.sflag [#allocation4], %s712
          %s714 = sand.u32 %s144, 1
          %s715 = scalar_lea.vmem [#allocation3], %s714
          %s717 = ssub.s32 16, 16
          %718 = vsyncadd %s713, %s717
          %s719 = smul.addr %s51, 16
          %s720 = scalar_lea.hbm %s3, %s719
          %s722 = sshll.u32 %s715, 4
          %s723 = int_to_ptr.vmem [resolvable:$true] %s722
          %725 = dma.hbm_to_vmem [thread:$0]  %s720, 16, %s723, %s713
        $region40: #{tpu_custom_call.1} parent=23 // pred_fallthru
          _
        // Predicated region
        $region41: #{tpu_custom_call.1} parent=23 // pred_check
          %p726 = pneg %p222
        $region42: #{tpu_custom_call.1} parent=23 // pred_check_branch
          %728 = sbr.rel (%p726) target = $region44
        $region43: #{tpu_custom_call.1} parent=23 // pred_region
          %p729 = scmp.lt.s32.totalorder %s52, 1
          %s730 = scalar_select %p729, %s52, 1
          %s731 = smul.addr %s730, 4
          %s732 = smul.addr %s731, 4
          %s733 = scalar_lea.vmem %s6, %s732
        $region44: #{tpu_custom_call.1} parent=23 // pred_fallthru
          _
        // Predicated region
        $region45: #{tpu_custom_call.1} parent=23 // pred_check
          %p734 = pneg %p248
        $region46: #{tpu_custom_call.1} parent=23 // pred_check_branch
          %736 = sbr.rel (%p734) target = $region48
        $region47: #{tpu_custom_call.1} parent=23 // pred_region
          %s737 = sand.u32 %s44, 1
          %s738 = scalar_lea.sflag [#allocation10], %s737
          %s739 = sand.u32 %s238, 1
          %s740 = scalar_lea.vmem [#allocation9], %s739
          %s742 = ssub.s32 16, 16
          %743 = vsyncadd %s738, %s742
          %s744 = smul.addr %s52, 16
          %s745 = scalar_lea.hbm %s7, %s744
          %s747 = sshll.u32 %s740, 4
          %s748 = int_to_ptr.vmem [resolvable:$true] %s747
          %750 = dma.hbm_to_vmem [thread:$0]  %s745, 16, %s748, %s738
        $region48: #{tpu_custom_call.1} parent=23 // pred_fallthru
          _
        // Predicated region
        $region49: #{tpu_custom_call.1} parent=23 // pred_check
          %p751 = pneg %p274
        $region50: #{tpu_custom_call.1} parent=23 // pred_check_branch
          %753 = sbr.rel (%p751) target = $region52
        $region51: #{tpu_custom_call.1} parent=23 // pred_region
          %p754 = scmp.lt.s32.totalorder %s52, 1
          %s755 = scalar_select %p754, %s52, 1
          %s756 = smul.addr %s755, 4
          %s757 = smul.addr %s756, 4
          %s758 = scalar_lea.vmem %s8, %s757
        $region52: #{tpu_custom_call.1} parent=23 // pred_fallthru
          _
        // Predicated region
        $region53: #{tpu_custom_call.1} parent=23 // pred_check
          %p759 = pneg %p300
        $region54: #{tpu_custom_call.1} parent=23 // pred_check_branch
          %761 = sbr.rel (%p759) target = $region56
        $region55: #{tpu_custom_call.1} parent=23 // pred_region
          %s762 = sand.u32 %s44, 1
          %s763 = scalar_lea.sflag [#allocation10], %s762
          %s764 = sand.u32 %s290, 1
          %s765 = scalar_lea.vmem [#allocation11], %s764
          %s767 = ssub.s32 16, 16
          %768 = vsyncadd %s763, %s767
          %s769 = smul.addr %s52, 16
          %s770 = scalar_lea.hbm %s9, %s769
          %s772 = sshll.u32 %s765, 4
          %s773 = int_to_ptr.vmem [resolvable:$true] %s772
          %775 = dma.hbm_to_vmem [thread:$0]  %s770, 16, %s773, %s763
        $region56: #{tpu_custom_call.1} parent=23 // pred_fallthru
          _
        // Predicated region
        $region57: #{tpu_custom_call.1} parent=23 // pred_check
          %p776 = pneg %p326
        $region58: #{tpu_custom_call.1} parent=23 // pred_check_branch
          %778 = sbr.rel (%p776) target = $region60
        $region59: #{tpu_custom_call.1} parent=23 // pred_region
          %p779 = scmp.lt.s32.totalorder %s52, 1
          %s780 = scalar_select %p779, %s52, 1
          %s781 = smul.addr %s780, 4
          %s782 = smul.addr %s781, 4
          %s783 = scalar_lea.vmem %s10, %s782
        $region60: #{tpu_custom_call.1} parent=23 // pred_fallthru
          _
        // Predicated region
        $region61: #{tpu_custom_call.1} parent=23 // pred_check
          %p784 = pneg %p352
        $region62: #{tpu_custom_call.1} parent=23 // pred_check_branch
          %786 = sbr.rel (%p784) target = $region64
        $region63: #{tpu_custom_call.1} parent=23 // pred_region
          %s787 = sand.u32 %s44, 1
          %s788 = scalar_lea.sflag [#allocation13], %s787
          %s789 = sand.u32 %s342, 1
          %s790 = scalar_lea.vmem [#allocation12], %s789
          %s792 = ssub.s32 16, 16
          %793 = vsyncadd %s788, %s792
          %s794 = smul.addr %s52, 16
          %s795 = scalar_lea.hbm %s11, %s794
          %s797 = sshll.u32 %s790, 4
          %s798 = int_to_ptr.vmem [resolvable:$true] %s797
          %800 = dma.hbm_to_vmem [thread:$0]  %s795, 16, %s798, %s788
        $region64: #{tpu_custom_call.1} parent=23 // pred_fallthru
          _
        // Predicated region
        $region65: #{tpu_custom_call.1} parent=23 // pred_check
          %p801 = pneg %p378
        $region66: #{tpu_custom_call.1} parent=23 // pred_check_branch
          %803 = sbr.rel (%p801) target = $region68
        $region67: #{tpu_custom_call.1} parent=23 // pred_region
          %p804 = scmp.lt.s32.totalorder %s52, 1
          %s805 = scalar_select %p804, %s52, 1
          %s806 = smul.addr %s805, 4
          %s807 = smul.addr %s806, 4
          %s808 = scalar_lea.vmem %s12, %s807
        $region68: #{tpu_custom_call.1} parent=23 // pred_fallthru
          _
        // Predicated region
        $region69: #{tpu_custom_call.1} parent=23 // pred_check
          %p809 = pneg %p404
        $region70: #{tpu_custom_call.1} parent=23 // pred_check_branch
          %811 = sbr.rel (%p809) target = $region72
        $region71: #{tpu_custom_call.1} parent=23 // pred_region
          %s812 = sand.u32 %s44, 1
          %s813 = scalar_lea.sflag [#allocation13], %s812
          %s814 = sand.u32 %s394, 1
          %s815 = scalar_lea.vmem [#allocation14], %s814
          %s817 = ssub.s32 16, 16
          %818 = vsyncadd %s813, %s817
          %s819 = smul.addr %s52, 16
          %s820 = scalar_lea.hbm %s13, %s819
          %s822 = sshll.u32 %s815, 4
          %s823 = int_to_ptr.vmem [resolvable:$true] %s822
          %825 = dma.hbm_to_vmem [thread:$0]  %s820, 16, %s823, %s813
        $region72: #{tpu_custom_call.1} parent=23 // pred_fallthru
          _
        // Predicated region
        $region73: #{tpu_custom_call.1} parent=23 // pred_check
          %p826 = pneg %p430
        $region74: #{tpu_custom_call.1} parent=23 // pred_check_branch
          %828 = sbr.rel (%p826) target = $region76
        $region75: #{tpu_custom_call.1} parent=23 // pred_region
          %s829 = sand.u32 %s44, 1
          %s830 = scalar_lea.sflag [#allocation16], %s829
          %s831 = sand.u32 %s420, 1
          %s832 = scalar_lea.vmem [#allocation15], %s831
          %s834 = ssub.s32 16, 16
          %835 = vsyncadd %s830, %s834
          %s836 = smul.addr %s52, 16
          %s837 = scalar_lea.hbm %s14, %s836
          %s839 = sshll.u32 %s832, 4
          %s840 = int_to_ptr.vmem [resolvable:$true] %s839
          %842 = dma.hbm_to_vmem [thread:$0]  %s837, 16, %s840, %s830
        $region76: #{tpu_custom_call.1} parent=23 // pred_fallthru
          _
        // Predicated region
        $region77: #{tpu_custom_call.1} parent=23 // pred_check
          %p843 = pneg %p456
        $region78: #{tpu_custom_call.1} parent=23 // pred_check_branch
          %845 = sbr.rel (%p843) target = $region80
        $region79: #{tpu_custom_call.1} parent=23 // pred_region
          %s846 = sand.u32 %s44, 1
          %s847 = scalar_lea.sflag [#allocation16], %s846
          %s848 = sand.u32 %s446, 1
          %s849 = scalar_lea.vmem [#allocation17], %s848
          %s851 = ssub.s32 16, 16
          %852 = vsyncadd %s847, %s851
          %s853 = smul.addr %s52, 16
          %s854 = scalar_lea.hbm %s15, %s853
          %s856 = sshll.u32 %s849, 4
          %s857 = int_to_ptr.vmem [resolvable:$true] %s856
          %859 = dma.hbm_to_vmem [thread:$0]  %s854, 16, %s857, %s847
        $region80: #{tpu_custom_call.1} parent=23 // pred_fallthru
          _
        // Predicated region
        $region81: #{tpu_custom_call.1} parent=23 // pred_check
          %p860 = pneg %p482
        $region82: #{tpu_custom_call.1} parent=23 // pred_check_branch
          %862 = sbr.rel (%p860) target = $region84
        $region83: #{tpu_custom_call.1} parent=23 // pred_region
          %p863 = scmp.lt.s32.totalorder %s52, 1
          %s864 = scalar_select %p863, %s52, 1
          %s865 = smul.addr %s864, 4
          %s866 = smul.addr %s865, 4
          %s867 = scalar_lea.vmem %s16, %s866
        $region84: #{tpu_custom_call.1} parent=23 // pred_fallthru
          _
        // Predicated region
        $region85: #{tpu_custom_call.1} parent=23 // pred_check
          %p868 = pneg %p508
        $region86: #{tpu_custom_call.1} parent=23 // pred_check_branch
          %870 = sbr.rel (%p868) target = $region88
        $region87: #{tpu_custom_call.1} parent=23 // pred_region
          %p871 = scmp.lt.s32.totalorder %s52, 1
          %s872 = scalar_select %p871, %s52, 1
          %s873 = scalar_lea.vmem %s17, %s872
        $region88: #{tpu_custom_call.1} parent=23 // pred_fallthru
          _
        // Predicated region
        $region89: #{tpu_custom_call.1} parent=23 // pred_check
          %p874 = pneg %p534
        $region90: #{tpu_custom_call.1} parent=23 // pred_check_branch
          %876 = sbr.rel (%p874) target = $region92
        $region91: #{tpu_custom_call.1} parent=23 // pred_region
          %p877 = scmp.lt.s32.totalorder %s52, 1
          %s878 = scalar_select %p877, %s52, 1
          %s879 = smul.addr %s878, 8
          %s880 = smul.addr %s879, 4
          %s881 = scalar_lea.vmem %s18, %s880
        $region92: #{tpu_custom_call.1} parent=23 // pred_fallthru
          _
        // Predicated region
        $region93: #{tpu_custom_call.1} parent=23 // pred_check
          %p882 = pneg %p560
        $region94: #{tpu_custom_call.1} parent=23 // pred_check_branch
          %884 = sbr.rel (%p882) target = $region96
        $region95: #{tpu_custom_call.1} parent=23 // pred_region
          %p885 = scmp.lt.s32.totalorder %s52, 1
          %s886 = scalar_select %p885, %s52, 1
          %s887 = scalar_lea.vmem %s19, %s886
        $region96: #{tpu_custom_call.1} parent=23 // pred_fallthru
          _
        // Predicated region
        $region97: #{tpu_custom_call.1} parent=23 // pred_check
          %p888 = pneg %p586
        $region98: #{tpu_custom_call.1} parent=23 // pred_check_branch
          %890 = sbr.rel (%p888) target = $region100
        $region99: #{tpu_custom_call.1} parent=23 // pred_region
          %p891 = scmp.lt.s32.totalorder %s52, 1
          %s892 = scalar_select %p891, %s52, 1
          %s893 = scalar_lea.vmem %s20, %s892
        $region100: #{tpu_custom_call.1} parent=23 // pred_fallthru
          _
        // Predicated region
        $region101: #{tpu_custom_call.1} parent=23 // pred_check
          %p894 = pneg %p612
        $region102: #{tpu_custom_call.1} parent=23 // pred_check_branch
          %896 = sbr.rel (%p894) target = $region104
        $region103: #{tpu_custom_call.1} parent=23 // pred_region
          %p897 = scmp.lt.s32.totalorder %s52, 1
          %s898 = scalar_select %p897, %s52, 1
          %s899 = scalar_lea.vmem %s21, %s898
        $region104: #{tpu_custom_call.1} parent=23 // pred_fallthru
          _
      $region24: #{tpu_custom_call.1} parent=5 // pred_fallthru
        _
      %p900 = scmp.le.s32.totalorder 1, %s44
      %p901 = scmp.lt.s32.totalorder %s44, 5
      %p902 = pnand %p900, %p901
      %p903 = pneg %p902
      // Predicated region
      $region105: #{tpu_custom_call.1} parent=5 // pred_check
        _
      $region106: #{tpu_custom_call.1} parent=5 // pred_check_branch
        %905 = sbr.rel (%p902) target = $region108
      $region107: #{tpu_custom_call.1} parent=5 // pred_region
        %s906 = ssub.s32 %s44, 1
        %s907 = sand.u32 %s147, 1
        %s908 = scalar_lea.sflag [#allocation4], %s907
        %s909 = sand.u32 %s147, 1
        %s910 = scalar_lea.vmem [#allocation3], %s909
        // Predicated region
        $region109: #{tpu_custom_call.1} parent=107 // pred_check
          %p911 = pneg %p160
        $region110: #{tpu_custom_call.1} parent=107 // pred_check_branch
          %913 = sbr.rel (%p911) target = $region112
        $region111: #{tpu_custom_call.1} parent=107 // pred_region
          %914 = dma.done %s908, 16
        $region112: #{tpu_custom_call.1} parent=107 // pred_fallthru
          _
        // Predicated region
        $region113: #{tpu_custom_call.1} parent=107 // pred_check
          %p915 = pneg %p181
        $region114: #{tpu_custom_call.1} parent=107 // pred_check_branch
          %917 = sbr.rel (%p915) target = $region116
        $region115: #{tpu_custom_call.1} parent=107 // pred_region
          %918 = dma.done [#allocation7], 64
        $region116: #{tpu_custom_call.1} parent=107 // pred_fallthru
          _
        // Predicated region
        $region117: #{tpu_custom_call.1} parent=107 // pred_check
          %p919 = pneg %p202
        $region118: #{tpu_custom_call.1} parent=107 // pred_check_branch
          %921 = sbr.rel (%p919) target = $region120
        $region119: #{tpu_custom_call.1} parent=107 // pred_region
          %922 = dma.done [#allocation7], 16
        $region120: #{tpu_custom_call.1} parent=107 // pred_fallthru
          _
        %s923 = sand.u32 %s49, 1
        %s924 = scalar_lea.sflag [#allocation10], %s923
        %s925 = sand.u32 %s241, 1
        %s926 = scalar_lea.vmem [#allocation9], %s925
        // Predicated region
        $region121: #{tpu_custom_call.1} parent=107 // pred_check
          %p927 = pneg %p254
        $region122: #{tpu_custom_call.1} parent=107 // pred_check_branch
          %929 = sbr.rel (%p927) target = $region124
        $region123: #{tpu_custom_call.1} parent=107 // pred_region
          %930 = dma.done %s924, 16
        $region124: #{tpu_custom_call.1} parent=107 // pred_fallthru
          _
        %s931 = sand.u32 %s49, 1
        %s932 = scalar_lea.sflag [#allocation10], %s931
        %s933 = sand.u32 %s293, 1
        %s934 = scalar_lea.vmem [#allocation11], %s933
        // Predicated region
        $region125: #{tpu_custom_call.1} parent=107 // pred_check
          %p935 = pneg %p306
        $region126: #{tpu_custom_call.1} parent=107 // pred_check_branch
          %937 = sbr.rel (%p935) target = $region128
        $region127: #{tpu_custom_call.1} parent=107 // pred_region
          %938 = dma.done %s932, 16
        $region128: #{tpu_custom_call.1} parent=107 // pred_fallthru
          _
        %s939 = sand.u32 %s49, 1
        %s940 = scalar_lea.sflag [#allocation13], %s939
        %s941 = sand.u32 %s345, 1
        %s942 = scalar_lea.vmem [#allocation12], %s941
        // Predicated region
        $region129: #{tpu_custom_call.1} parent=107 // pred_check
          %p943 = pneg %p358
        $region130: #{tpu_custom_call.1} parent=107 // pred_check_branch
          %945 = sbr.rel (%p943) target = $region132
        $region131: #{tpu_custom_call.1} parent=107 // pred_region
          %946 = dma.done %s940, 16
        $region132: #{tpu_custom_call.1} parent=107 // pred_fallthru
          _
        %s947 = sand.u32 %s49, 1
        %s948 = scalar_lea.sflag [#allocation13], %s947
        %s949 = sand.u32 %s397, 1
        %s950 = scalar_lea.vmem [#allocation14], %s949
        // Predicated region
        $region133: #{tpu_custom_call.1} parent=107 // pred_check
          %p951 = pneg %p410
        $region134: #{tpu_custom_call.1} parent=107 // pred_check_branch
          %953 = sbr.rel (%p951) target = $region136
        $region135: #{tpu_custom_call.1} parent=107 // pred_region
          %954 = dma.done %s948, 16
        $region136: #{tpu_custom_call.1} parent=107 // pred_fallthru
          _
        %s955 = sand.u32 %s49, 1
        %s956 = scalar_lea.sflag [#allocation16], %s955
        %s957 = sand.u32 %s423, 1
        %s958 = scalar_lea.vmem [#allocation15], %s957
        // Predicated region
        $region137: #{tpu_custom_call.1} parent=107 // pred_check
          %p959 = pneg %p436
        $region138: #{tpu_custom_call.1} parent=107 // pred_check_branch
          %961 = sbr.rel (%p959) target = $region140
        $region139: #{tpu_custom_call.1} parent=107 // pred_region
          %962 = dma.done %s956, 16
        $region140: #{tpu_custom_call.1} parent=107 // pred_fallthru
          _
        %s963 = sand.u32 %s49, 1
        %s964 = scalar_lea.sflag [#allocation16], %s963
        %s965 = sand.u32 %s449, 1
        %s966 = scalar_lea.vmem [#allocation17], %s965
        // Predicated region
        $region141: #{tpu_custom_call.1} parent=107 // pred_check
          %p967 = pneg %p462
        $region142: #{tpu_custom_call.1} parent=107 // pred_check_branch
          %969 = sbr.rel (%p967) target = $region144
        $region143: #{tpu_custom_call.1} parent=107 // pred_region
          %970 = dma.done %s964, 16
        $region144: #{tpu_custom_call.1} parent=107 // pred_fallthru
          _
        %p971 = scmp.lt.s32.totalorder %s53, 1
        %s972 = scalar_select %p971, %s53, 1
        %s973 = smul.addr %s972, 2
        %s974 = smul.addr %s973, 8
        %s975 = scalar_lea.vmem %s0, %s974
        %p976 = pneg %p82
        %p977 = pneg %p79
        %p978 = scmp.lt.s32.totalorder %s53, 1
        %s979 = scalar_select %p978, %s53, 1
        %s980 = smul.addr %s979, 2
        %s981 = smul.addr %s980, 8
        %s982 = scalar_lea.vmem %s1, %s981
        %p983 = pneg %p108
        %p984 = pneg %p105
        %p985 = scmp.lt.s32.totalorder %s53, 1
        %s986 = scalar_select %p985, %s53, 1
        %s987 = smul.addr %s986, 2
        %s988 = smul.addr %s987, 8
        %s989 = scalar_lea.vmem %s2, %s988
        %p990 = pneg %p134
        %p991 = pneg %p131
        %s992 = sand.u32 %s147, 1
        %s993 = scalar_lea.sflag [#allocation4], %s992
        %s994 = sand.u32 %s147, 1
        %s995 = scalar_lea.vmem [#allocation3], %s994
        %p996 = pneg %p160
        %p997 = pneg %p157
        %p998 = pneg %p181
        %p999 = pneg %p178
        %p1000 = pneg %p202
        %p1001 = pneg %p199
        %p1002 = scmp.lt.s32.totalorder %s54, 1
        %s1003 = scalar_select %p1002, %s54, 1
        %s1004 = smul.addr %s1003, 4
        %s1005 = smul.addr %s1004, 4
        %s1006 = scalar_lea.vmem %s6, %s1005
        %p1007 = pneg %p228
        %p1008 = pneg %p225
        %s1009 = sand.u32 %s49, 1
        %s1010 = scalar_lea.sflag [#allocation10], %s1009
        %s1011 = sand.u32 %s241, 1
        %s1012 = scalar_lea.vmem [#allocation9], %s1011
        %p1013 = pneg %p254
        %p1014 = pneg %p251
        %p1015 = scmp.lt.s32.totalorder %s54, 1
        %s1016 = scalar_select %p1015, %s54, 1
        %s1017 = smul.addr %s1016, 4
        %s1018 = smul.addr %s1017, 4
        %s1019 = scalar_lea.vmem %s8, %s1018
        %p1020 = pneg %p280
        %p1021 = pneg %p277
        %s1022 = sand.u32 %s49, 1
        %s1023 = scalar_lea.sflag [#allocation10], %s1022
        %s1024 = sand.u32 %s293, 1
        %s1025 = scalar_lea.vmem [#allocation11], %s1024
        %p1026 = pneg %p306
        %p1027 = pneg %p303
        %p1028 = scmp.lt.s32.totalorder %s54, 1
        %s1029 = scalar_select %p1028, %s54, 1
        %s1030 = smul.addr %s1029, 4
        %s1031 = smul.addr %s1030, 4
        %s1032 = scalar_lea.vmem %s10, %s1031
        %p1033 = pneg %p332
        %p1034 = pneg %p329
        %s1035 = sand.u32 %s49, 1
        %s1036 = scalar_lea.sflag [#allocation13], %s1035
        %s1037 = sand.u32 %s345, 1
        %s1038 = scalar_lea.vmem [#allocation12], %s1037
        %p1039 = pneg %p358
        %p1040 = pneg %p355
        %p1041 = scmp.lt.s32.totalorder %s54, 1
        %s1042 = scalar_select %p1041, %s54, 1
        %s1043 = smul.addr %s1042, 4
        %s1044 = smul.addr %s1043, 4
        %s1045 = scalar_lea.vmem %s12, %s1044
        %p1046 = pneg %p384
        %p1047 = pneg %p381
        %s1048 = sand.u32 %s49, 1
        %s1049 = scalar_lea.sflag [#allocation13], %s1048
        %s1050 = sand.u32 %s397, 1
        %s1051 = scalar_lea.vmem [#allocation14], %s1050
        %p1052 = pneg %p410
        %p1053 = pneg %p407
        %s1054 = sand.u32 %s49, 1
        %s1055 = scalar_lea.sflag [#allocation16], %s1054
        %s1056 = sand.u32 %s423, 1
        %s1057 = scalar_lea.vmem [#allocation15], %s1056
        %p1058 = pneg %p436
        %p1059 = pneg %p433
        %s1060 = sand.u32 %s49, 1
        %s1061 = scalar_lea.sflag [#allocation16], %s1060
        %s1062 = sand.u32 %s449, 1
        %s1063 = scalar_lea.vmem [#allocation17], %s1062
        %p1064 = pneg %p462
        %p1065 = pneg %p459
        %p1066 = scmp.lt.s32.totalorder %s54, 1
        %s1067 = scalar_select %p1066, %s54, 1
        %s1068 = smul.addr %s1067, 4
        %s1069 = smul.addr %s1068, 4
        %s1070 = scalar_lea.vmem %s16, %s1069
        %p1071 = pneg %p488
        %p1072 = pneg %p485
        %p1073 = scmp.lt.s32.totalorder %s54, 1
        %s1074 = scalar_select %p1073, %s54, 1
        %s1075 = scalar_lea.vmem %s17, %s1074
        %p1076 = pneg %p514
        %p1077 = pneg %p511
        %p1078 = scmp.lt.s32.totalorder %s54, 1
        %s1079 = scalar_select %p1078, %s54, 1
        %s1080 = smul.addr %s1079, 8
        %s1081 = smul.addr %s1080, 4
        %s1082 = scalar_lea.vmem %s18, %s1081
        %p1083 = pneg %p540
        %p1084 = pneg %p537
        %p1085 = scmp.lt.s32.totalorder %s54, 1
        %s1086 = scalar_select %p1085, %s54, 1
        %s1087 = scalar_lea.vmem %s19, %s1086
        %p1088 = pneg %p566
        %p1089 = pneg %p563
        %p1090 = scmp.lt.s32.totalorder %s54, 1
        %s1091 = scalar_select %p1090, %s54, 1
        %s1092 = scalar_lea.vmem %s20, %s1091
        %p1093 = pneg %p592
        %p1094 = pneg %p589
        %p1095 = scmp.lt.s32.totalorder %s54, 1
        %s1096 = scalar_select %p1095, %s54, 1
        %s1097 = scalar_lea.vmem %s21, %s1096
        %p1098 = pneg %p618
        %p1099 = pneg %p615
        %p1100 = pneg %p644
        %p1101 = pneg %p641
        %s1102 = sand.u32 %s631, 1
        %s1103 = scalar_lea.sflag [#allocation5], %s1102
        %s1104 = sand.u32 %s631, 1
        %s1105 = smul.addr %s1104, 16
        %s1106 = scalar_lea.vmem [#allocation18], %s1105
        %p1107 = scmp.lt.s32.totalorder %s53, 1
        %s1108 = scalar_select %p1107, %s53, 1
        %s1109 = smul.addr %s1108, 2
        %s1110 = smul.addr %s1109, 8
        %s1111 = scalar_lea.vmem %s0, %s1110
        %p1112 = scmp.lt.s32.totalorder %s53, 1
        %s1113 = scalar_select %p1112, %s53, 1
        %s1114 = smul.addr %s1113, 2
        %s1115 = smul.addr %s1114, 8
        %s1116 = scalar_lea.vmem %s1, %s1115
        %p1117 = scmp.lt.s32.totalorder %s53, 1
        %s1118 = scalar_select %p1117, %s53, 1
        %s1119 = smul.addr %s1118, 2
        %s1120 = smul.addr %s1119, 8
        %s1121 = scalar_lea.vmem %s2, %s1120
        %p1122 = scmp.lt.s32.totalorder %s54, 1
        %s1123 = scalar_select %p1122, %s54, 1
        %s1124 = smul.addr %s1123, 4
        %s1125 = smul.addr %s1124, 4
        %s1126 = scalar_lea.vmem %s6, %s1125
        %p1127 = scmp.lt.s32.totalorder %s54, 1
        %s1128 = scalar_select %p1127, %s54, 1
        %s1129 = smul.addr %s1128, 4
        %s1130 = smul.addr %s1129, 4
        %s1131 = scalar_lea.vmem %s8, %s1130
        %p1132 = scmp.lt.s32.totalorder %s54, 1
        %s1133 = scalar_select %p1132, %s54, 1
        %s1134 = smul.addr %s1133, 4
        %s1135 = smul.addr %s1134, 4
        %s1136 = scalar_lea.vmem %s10, %s1135
        %p1137 = scmp.lt.s32.totalorder %s54, 1
        %s1138 = scalar_select %p1137, %s54, 1
        %s1139 = smul.addr %s1138, 4
        %s1140 = smul.addr %s1139, 4
        %s1141 = scalar_lea.vmem %s12, %s1140
        %p1142 = scmp.lt.s32.totalorder %s54, 1
        %s1143 = scalar_select %p1142, %s54, 1
        %s1144 = smul.addr %s1143, 4
        %s1145 = smul.addr %s1144, 4
        %s1146 = scalar_lea.vmem %s16, %s1145
        %p1147 = scmp.lt.s32.totalorder %s54, 1
        %s1148 = scalar_select %p1147, %s54, 1
        %s1149 = scalar_lea.vmem %s17, %s1148
        %p1150 = scmp.lt.s32.totalorder %s54, 1
        %s1151 = scalar_select %p1150, %s54, 1
        %s1152 = smul.addr %s1151, 8
        %s1153 = smul.addr %s1152, 4
        %s1154 = scalar_lea.vmem %s18, %s1153
        %p1155 = scmp.lt.s32.totalorder %s54, 1
        %s1156 = scalar_select %p1155, %s54, 1
        %s1157 = scalar_lea.vmem %s19, %s1156
        %p1158 = scmp.lt.s32.totalorder %s54, 1
        %s1159 = scalar_select %p1158, %s54, 1
        %s1160 = scalar_lea.vmem %s20, %s1159
        %p1161 = scmp.lt.s32.totalorder %s54, 1
        %s1162 = scalar_select %p1161, %s54, 1
        %s1163 = scalar_lea.vmem %s21, %s1162
        %p1165 = scmp.eq.s32.totalorder %s54, 0
        // Predicated region
        $region145: #{tpu_custom_call.1} parent=107 // pred_check
          %p1166 = pneg %p1165
        $region146: #{tpu_custom_call.1} parent=107 // pred_check_branch
          %1168 = sbr.rel (%p1166) target = $region148
        $region147: #{tpu_custom_call.1} parent=107 // pred_region
          %v1169 = vld [vmem:[%s1111] sm:$0xff]
          %v1170 = vld [vmem:[%s1111 + $0x8] sm:$0xff]
          %v1171 = vld [vmem:[#allocation6] sm:$0x7]
          %v1172 = vld [vmem:[#allocation8] sm:$0x1]
          %v1174 = vlaneseq
          %v1175 = vshrl.u32 %v1174, 7
          %v1176 = vsub.s32 0, %v1175
          %v1177 = vrot.slane %v1172, %v1176
          %vm1179 = vcmask 23552
          %v1181 = vsel %vm1179, %v1169, 0
          %v1184 = vsel %vm1179, %v1170, 0
          %vm1186 = vcmask 1042432
          %v1188 = vsel %vm1186, %v1171, 0
          %1190 = vmatprep.subr.mxu0 0.0
          %1191 = vmatpush1.msra.mxu0 %v1188
          %1192 = vmatprep.subr.mxu0 0.0
          %1193 = vmatpush1.msra.mxu0 0.0
          %1194 = vmatprep.subr.mxu0 0.0
          %1195 = vmatpush1.msra.mxu0 0.0
          %1196 = vmatprep.subr.mxu0 0.0
          %1197 = vmatpush1.msra.mxu0 0.0
          %1198 = vmatprep.subr.mxu0 0.0
          %1199 = vmatpush1.msra.mxu0 0.0
          %1200 = vmatprep.subr.mxu0 0.0
          %1201 = vmatpush1.msra.mxu0 0.0
          %1202 = vmatprep.subr.mxu0 0.0
          %1203 = vmatpush1.msra.mxu0 0.0
          %1204 = vmatprep.subr.mxu0 0.0
          %1205 = vmatpush1.msra.mxu0 0.0
          %1206 = vmatprep.subr.mxu0 0.0
          %1207 = vmatpush1.msra.mxu0 0.0
          %1208 = vmatprep.subr.mxu0 0.0
          %1209 = vmatpush1.msra.mxu0 0.0
          %1210 = vmatprep.subr.mxu0 0.0
          %1211 = vmatpush1.msra.mxu0 0.0
          %1212 = vmatprep.subr.mxu0 0.0
          %1213 = vmatpush1.msra.mxu0 0.0
          %1214 = vmatprep.subr.mxu0 0.0
          %1215 = vmatpush1.msra.mxu0 0.0
          %1216 = vmatprep.subr.mxu0 0.0
          %1217 = vmatpush1.msra.mxu0 0.0
          %1218 = vmatprep.subr.mxu0 0.0
          %1219 = vmatpush1.msra.mxu0 0.0
          %1220 = vmatprep.subr.mxu0 0.0
          %1221 = vmatpush1.msra.mxu0 0.0
          %1222 = vmatprep.subr.mxu0 0.0
          %1223 = vmatpush1.msra.mxu0 0.0
          %1224 = vmatprep.subr.mxu0 0.0
          %1225 = vmatpush1.msra.mxu0 0.0
          %1226 = vmatprep.subr.mxu0 0.0
          %1227 = vmatpush1.msra.mxu0 0.0
          %1228 = vmatprep.subr.mxu0 0.0
          %1229 = vmatpush1.msra.mxu0 0.0
          %1230 = vmatprep.subr.mxu0 0.0
          %1231 = vmatpush1.msra.mxu0 0.0
          %1232 = vmatprep.subr.mxu0 0.0
          %1233 = vmatpush1.msra.mxu0 0.0
          %1234 = vmatprep.subr.mxu0 0.0
          %1235 = vmatpush1.msra.mxu0 0.0
          %1236 = vmatprep.subr.mxu0 0.0
          %1237 = vmatpush1.msra.mxu0 0.0
          %1238 = vmatprep.subr.mxu0 0.0
          %1239 = vmatpush1.msra.mxu0 0.0
          %1240 = vmatprep.subr.mxu0 0.0
          %1241 = vmatpush1.msra.mxu0 0.0
          %1242 = vmatprep.subr.mxu0 0.0
          %1243 = vmatpush1.msra.mxu0 0.0
          %1244 = vmatprep.subr.mxu0 0.0
          %1245 = vmatpush1.msra.mxu0 0.0
          %1246 = vmatprep.subr.mxu0 0.0
          %1247 = vmatpush1.msra.mxu0 0.0
          %1248 = vmatprep.subr.mxu0 0.0
          %1249 = vmatpush1.msra.mxu0 0.0
          %1250 = vmatprep.subr.mxu0 0.0
          %1251 = vmatpush1.msra.mxu0 0.0
          %1252 = vmatprep.subr.mxu0 0.0
          %1253 = vmatpush1.msra.mxu0 0.0
          %1254 = vmatprep.mubr.f32.mxu0 0.0
          %1255 = vmatmul.mubr.f32.gmra.mrb[0].mxu0 %v1181
          %v1256 = vpop.f32.mrb[0].mxu0
          %v1257 = vadd.f32 %v1177, %v1256
          %v1258 = vpop.f32.mrb[0].mxu0
          %1259 = vmatprep.mubr.f32.mxu0 0.0
          %1260 = vmatmul.mubr.f32.gmra.mrb[0].mxu0 %v1184
          %v1261 = vpop.f32.mrb[0].mxu0
          %v1262 = vadd.f32 %v1177, %v1261
          %v1263 = vpop.f32.mrb[0].mxu0
          %1264 = vdwg.mxu0
          %v1265 = vld [vmem:[%s1116] sm:$0xff]
          %v1266 = vld [vmem:[%s1116 + $0x8] sm:$0xff]
          %v1267 = vadd.f32 %v1257, %v1265
          %v1268 = vadd.f32 %v1262, %v1266
          %vm1269 = vcmask 261120
          %1270 = vst.msk [vmem:[#allocation2] sm:$0xff] %vm1269, %v1267
          %1271 = vst.msk [vmem:[#allocation2 + $0x8] sm:$0xff] %vm1269, %v1268
        $region148: #{tpu_custom_call.1} parent=107 // pred_fallthru
          _
        %v1272 = vld [vmem:[#allocation2] sm:$0xff]
        %v1273 = vld [vmem:[#allocation2 + $0x8] sm:$0xff]
        %v1274 = vld [vmem:[%s1121] sm:$0xff]
        %v1275 = vld [vmem:[%s1121 + $0x8] sm:$0xff]
        %v1276 = vld [vmem:[%s910] sm:$0x1]
        %v1277 = vpack.c.bf16 %v1273, %v1272
        %v1278 = vld [vmem:[%s1126] sm:$0xf]
        %v1279 = vld [vmem:[%s1126 + $0x4] sm:$0xf]
        %v1280 = vld [vmem:[%s1126 + $0x8] sm:$0xf]
        %v1281 = vld [vmem:[%s1126 + $0xc] sm:$0xf]
        %v1282 = vld [vmem:[%s926] sm:$0x1]
        %v1284 = vlaneseq
        %v1285 = vshrl.u32 %v1284, 7
        %v1286 = vsub.s32 0, %v1285
        %v1287 = vrot.slane %v1282, %v1286
        %v1293 = vunpack.c.l.b16 %v1278
        %v1294 = vunpack.c.l.b16 %v1279
        %v1295 = vunpack.c.l.b16 %v1280
        %v1296 = vunpack.c.l.b16 %v1281
        %v1297 = vpack.c.b16 %v1294, %v1293
        %v1298 = vpack.c.b16 %v1296, %v1295
        %vm1301 = vcmask 261120
        %v1303 = vsel %vm1301, %v1277, 0
        %1305 = vmatprep.subr.bf16.mxu0 0
        %1306 = vmatpush1.bf16.msra.mxu0 %v1297
        %1307 = vmatprep.subr.bf16.mxu0 0
        %1308 = vmatpush1.bf16.msra.mxu0 %v1298
        %1309 = vmatprep.subr.bf16.mxu0 0
        %1310 = vmatpush1.bf16.msra.mxu0 0
        %1311 = vmatprep.subr.bf16.mxu0 0
        %1312 = vmatpush1.bf16.msra.mxu0 0
        %1313 = vmatprep.subr.bf16.mxu0 0
        %1314 = vmatpush1.bf16.msra.mxu0 0
        %1315 = vmatprep.subr.bf16.mxu0 0
        %1316 = vmatpush1.bf16.msra.mxu0 0
        %1317 = vmatprep.subr.bf16.mxu0 0
        %1318 = vmatpush1.bf16.msra.mxu0 0
        %1319 = vmatprep.subr.bf16.mxu0 0
        %1320 = vmatpush1.bf16.msra.mxu0 0
        %1321 = vmatprep.subr.bf16.mxu0 0
        %1322 = vmatpush1.bf16.msra.mxu0 0
        %1323 = vmatprep.subr.bf16.mxu0 0
        %1324 = vmatpush1.bf16.msra.mxu0 0
        %1325 = vmatprep.subr.bf16.mxu0 0
        %1326 = vmatpush1.bf16.msra.mxu0 0
        %1327 = vmatprep.subr.bf16.mxu0 0
        %1328 = vmatpush1.bf16.msra.mxu0 0
        %1329 = vmatprep.subr.bf16.mxu0 0
        %1330 = vmatpush1.bf16.msra.mxu0 0
        %1331 = vmatprep.subr.bf16.mxu0 0
        %1332 = vmatpush1.bf16.msra.mxu0 0
        %1333 = vmatprep.subr.bf16.mxu0 0
        %1334 = vmatpush1.bf16.msra.mxu0 0
        %1335 = vmatprep.subr.bf16.mxu0 0
        %1336 = vmatpush1.bf16.msra.mxu0 0
        %1337 = vmatprep.mubr.bf16.mxu0 0
        %1338 = vmatmul.mubr.bf16.gmra.mrb[0].mxu0 %v1303
        %v1339 = vpop.f32.mrb[0].mxu0
        %v1340 = vadd.f32 %v1287, %v1339
        %v1341 = vpop.f32.mrb[0].mxu0
        %v1342 = vpop.f32.mrb[0].mxu0
        %v1343 = vadd.f32 %v1287, %v1342
        %v1344 = vpop.f32.mrb[0].mxu0
        %1345 = vdwg.mxu0
        %v1346 = vld [vmem:[%s1131] sm:$0xf]
        %v1347 = vld [vmem:[%s1131 + $0x4] sm:$0xf]
        %v1348 = vld [vmem:[%s1131 + $0x8] sm:$0xf]
        %v1349 = vld [vmem:[%s1131 + $0xc] sm:$0xf]
        %v1350 = vld [vmem:[%s934] sm:$0x1]
        %v1352 = vlaneseq
        %v1353 = vshrl.u32 %v1352, 7
        %v1354 = vsub.s32 0, %v1353
        %v1355 = vrot.slane %v1350, %v1354
        %v1361 = vunpack.c.l.b16 %v1346
        %v1362 = vunpack.c.l.b16 %v1347
        %v1363 = vunpack.c.l.b16 %v1348
        %v1364 = vunpack.c.l.b16 %v1349
        %v1365 = vpack.c.b16 %v1362, %v1361
        %v1366 = vpack.c.b16 %v1364, %v1363
        %1369 = vmatprep.subr.bf16.mxu0 0
        %1370 = vmatpush1.bf16.msra.mxu0 %v1365
        %1371 = vmatprep.subr.bf16.mxu0 0
        %1372 = vmatpush1.bf16.msra.mxu0 %v1366
        %1373 = vmatprep.subr.bf16.mxu0 0
        %1374 = vmatpush1.bf16.msra.mxu0 0
        %1375 = vmatprep.subr.bf16.mxu0 0
        %1376 = vmatpush1.bf16.msra.mxu0 0
        %1377 = vmatprep.subr.bf16.mxu0 0
        %1378 = vmatpush1.bf16.msra.mxu0 0
        %1379 = vmatprep.subr.bf16.mxu0 0
        %1380 = vmatpush1.bf16.msra.mxu0 0
        %1381 = vmatprep.subr.bf16.mxu0 0
        %1382 = vmatpush1.bf16.msra.mxu0 0
        %1383 = vmatprep.subr.bf16.mxu0 0
        %1384 = vmatpush1.bf16.msra.mxu0 0
        %1385 = vmatprep.subr.bf16.mxu0 0
        %1386 = vmatpush1.bf16.msra.mxu0 0
        %1387 = vmatprep.subr.bf16.mxu0 0
        %1388 = vmatpush1.bf16.msra.mxu0 0
        %1389 = vmatprep.subr.bf16.mxu0 0
        %1390 = vmatpush1.bf16.msra.mxu0 0
        %1391 = vmatprep.subr.bf16.mxu0 0
        %1392 = vmatpush1.bf16.msra.mxu0 0
        %1393 = vmatprep.subr.bf16.mxu0 0
        %1394 = vmatpush1.bf16.msra.mxu0 0
        %1395 = vmatprep.subr.bf16.mxu0 0
        %1396 = vmatpush1.bf16.msra.mxu0 0
        %1397 = vmatprep.subr.bf16.mxu0 0
        %1398 = vmatpush1.bf16.msra.mxu0 0
        %1399 = vmatprep.subr.bf16.mxu0 0
        %1400 = vmatpush1.bf16.msra.mxu0 0
        %1401 = vmatprep.mubr.bf16.mxu0 0
        %1402 = vmatmul.mubr.bf16.gmra.mrb[0].mxu0 %v1303
        %v1403 = vpop.f32.mrb[0].mxu0
        %v1404 = vadd.f32 %v1355, %v1403
        %v1405 = vpop.f32.mrb[0].mxu0
        %v1406 = vpop.f32.mrb[0].mxu0
        %v1407 = vadd.f32 %v1355, %v1406
        %v1408 = vpop.f32.mrb[0].mxu0
        %1409 = vdwg.mxu0
        %v1410 = vld [vmem:[%s1136] sm:$0xf]
        %v1411 = vld [vmem:[%s1136 + $0x4] sm:$0xf]
        %v1412 = vld [vmem:[%s1136 + $0x8] sm:$0xf]
        %v1413 = vld [vmem:[%s1136 + $0xc] sm:$0xf]
        %v1414 = vld [vmem:[%s942] sm:$0x1]
        %v1416 = vlaneseq
        %v1417 = vshrl.u32 %v1416, 7
        %v1418 = vsub.s32 0, %v1417
        %v1419 = vrot.slane %v1414, %v1418
        %v1425 = vunpack.c.l.b16 %v1410
        %v1426 = vunpack.c.l.b16 %v1411
        %v1427 = vunpack.c.l.b16 %v1412
        %v1428 = vunpack.c.l.b16 %v1413
        %v1429 = vpack.c.b16 %v1426, %v1425
        %v1430 = vpack.c.b16 %v1428, %v1427
        %1433 = vmatprep.subr.bf16.mxu0 0
        %1434 = vmatpush1.bf16.msra.mxu0 %v1429
        %1435 = vmatprep.subr.bf16.mxu0 0
        %1436 = vmatpush1.bf16.msra.mxu0 %v1430
        %1437 = vmatprep.subr.bf16.mxu0 0
        %1438 = vmatpush1.bf16.msra.mxu0 0
        %1439 = vmatprep.subr.bf16.mxu0 0
        %1440 = vmatpush1.bf16.msra.mxu0 0
        %1441 = vmatprep.subr.bf16.mxu0 0
        %1442 = vmatpush1.bf16.msra.mxu0 0
        %1443 = vmatprep.subr.bf16.mxu0 0
        %1444 = vmatpush1.bf16.msra.mxu0 0
        %1445 = vmatprep.subr.bf16.mxu0 0
        %1446 = vmatpush1.bf16.msra.mxu0 0
        %1447 = vmatprep.subr.bf16.mxu0 0
        %1448 = vmatpush1.bf16.msra.mxu0 0
        %1449 = vmatprep.subr.bf16.mxu0 0
        %1450 = vmatpush1.bf16.msra.mxu0 0
        %1451 = vmatprep.subr.bf16.mxu0 0
        %1452 = vmatpush1.bf16.msra.mxu0 0
        %1453 = vmatprep.subr.bf16.mxu0 0
        %1454 = vmatpush1.bf16.msra.mxu0 0
        %1455 = vmatprep.subr.bf16.mxu0 0
        %1456 = vmatpush1.bf16.msra.mxu0 0
        %1457 = vmatprep.subr.bf16.mxu0 0
        %1458 = vmatpush1.bf16.msra.mxu0 0
        %1459 = vmatprep.subr.bf16.mxu0 0
        %1460 = vmatpush1.bf16.msra.mxu0 0
        %1461 = vmatprep.subr.bf16.mxu0 0
        %1462 = vmatpush1.bf16.msra.mxu0 0
        %1463 = vmatprep.subr.bf16.mxu0 0
        %1464 = vmatpush1.bf16.msra.mxu0 0
        %1465 = vmatprep.mubr.bf16.mxu0 0
        %1466 = vmatmul.mubr.bf16.gmra.mrb[0].mxu0 %v1303
        %v1467 = vpop.f32.mrb[0].mxu0
        %v1468 = vadd.f32 %v1419, %v1467
        %v1469 = vpop.f32.mrb[0].mxu0
        %v1470 = vpop.f32.mrb[0].mxu0
        %v1471 = vadd.f32 %v1419, %v1470
        %v1472 = vpop.f32.mrb[0].mxu0
        %1473 = vdwg.mxu0
        %1476 = vrot.lane.b32.xlu0 %v1340, 112
        %v1477 = vpop.permute.xlu0 %1476
        %1478 = vrot.lane.b32.xlu0 %v1343, 112
        %v1479 = vpop.permute.xlu0 %1478
        %v1482 = vpack.c.bf16 %v1343, %v1340
        %v1483 = vpack.c.bf16 %v1479, %v1477
        %1486 = vrot.lane.b32.xlu0 %v1404, 112
        %v1487 = vpop.permute.xlu0 %1486
        %1488 = vrot.lane.b32.xlu0 %v1407, 112
        %v1489 = vpop.permute.xlu0 %1488
        %v1492 = vpack.c.bf16 %v1407, %v1404
        %v1493 = vpack.c.bf16 %v1489, %v1487
        %1496 = vrot.lane.b32.xlu0 %v1468, 112
        %v1497 = vpop.permute.xlu0 %1496
        %1498 = vrot.lane.b32.xlu0 %v1471, 112
        %v1499 = vpop.permute.xlu0 %1498
        %v1502 = vpack.c.bf16 %v1471, %v1468
        %v1503 = vpack.c.bf16 %v1499, %v1497
        %vm1504 = vcmask 130048
        %v1506 = vsel %vm1504, %v1482, 0
        %v1509 = vsel %vm1504, %v1492, 0
        %1511 = vmatprep.subr.bf16.mxu0 0
        %1512 = vmatpush1.bf16.xpose.msra.mxu0 %v1509
        %1513 = vmatprep.subr.bf16.mxu0 0
        %1514 = vmatpush1.bf16.xpose.msra.mxu0 0
        %1515 = vmatprep.subr.bf16.mxu0 0
        %1516 = vmatpush1.bf16.xpose.msra.mxu0 0
        %1517 = vmatprep.subr.bf16.mxu0 0
        %1518 = vmatpush1.bf16.xpose.msra.mxu0 0
        %1519 = vmatprep.subr.bf16.mxu0 0
        %1520 = vmatpush1.bf16.xpose.msra.mxu0 0
        %1521 = vmatprep.subr.bf16.mxu0 0
        %1522 = vmatpush1.bf16.xpose.msra.mxu0 0
        %1523 = vmatprep.subr.bf16.mxu0 0
        %1524 = vmatpush1.bf16.xpose.msra.mxu0 0
        %1525 = vmatprep.subr.bf16.mxu0 0
        %1526 = vmatpush1.bf16.xpose.msra.mxu0 0
        %1527 = vmatprep.subr.bf16.mxu0 0
        %1528 = vmatpush1.bf16.xpose.msra.mxu0 0
        %1529 = vmatprep.subr.bf16.mxu0 0
        %1530 = vmatpush1.bf16.xpose.msra.mxu0 0
        %1531 = vmatprep.subr.bf16.mxu0 0
        %1532 = vmatpush1.bf16.xpose.msra.mxu0 0
        %1533 = vmatprep.subr.bf16.mxu0 0
        %1534 = vmatpush1.bf16.xpose.msra.mxu0 0
        %1535 = vmatprep.subr.bf16.mxu0 0
        %1536 = vmatpush1.bf16.xpose.msra.mxu0 0
        %1537 = vmatprep.subr.bf16.mxu0 0
        %1538 = vmatpush1.bf16.xpose.msra.mxu0 0
        %1539 = vmatprep.subr.bf16.mxu0 0
        %1540 = vmatpush1.bf16.xpose.msra.mxu0 0
        %1541 = vmatprep.subr.bf16.mxu0 0
        %1542 = vmatpush1.bf16.xpose.msra.mxu0 0
        %1543 = vmatprep.mubr.bf16.mxu0 0
        %1544 = vmatmul.mubr.bf16.gmra.mrb[0].mxu0 %v1506
        %v1545 = vpop.f32.mrb[0].mxu0
        %v1546 = vadd.f32 0.0, %v1545
        %v1547 = vpop.f32.mrb[0].mxu0
        %v1548 = vpop.f32.mrb[0].mxu0
        %v1549 = vadd.f32 0.0, %v1548
        %v1550 = vpop.f32.mrb[0].mxu0
        %1551 = vdwg.mxu0
        %v1553 = vsel %vm1504, %v1483, 0
        %v1556 = vsel %vm1504, %v1493, 0
        %1558 = vmatprep.subr.bf16.mxu0 0
        %1559 = vmatpush1.bf16.xpose.msra.mxu0 %v1556
        %1560 = vmatprep.subr.bf16.mxu0 0
        %1561 = vmatpush1.bf16.xpose.msra.mxu0 0
        %1562 = vmatprep.subr.bf16.mxu0 0
        %1563 = vmatpush1.bf16.xpose.msra.mxu0 0
        %1564 = vmatprep.subr.bf16.mxu0 0
        %1565 = vmatpush1.bf16.xpose.msra.mxu0 0
        %1566 = vmatprep.subr.bf16.mxu0 0
        %1567 = vmatpush1.bf16.xpose.msra.mxu0 0
        %1568 = vmatprep.subr.bf16.mxu0 0
        %1569 = vmatpush1.bf16.xpose.msra.mxu0 0
        %1570 = vmatprep.subr.bf16.mxu0 0
        %1571 = vmatpush1.bf16.xpose.msra.mxu0 0
        %1572 = vmatprep.subr.bf16.mxu0 0
        %1573 = vmatpush1.bf16.xpose.msra.mxu0 0
        %1574 = vmatprep.subr.bf16.mxu0 0
        %1575 = vmatpush1.bf16.xpose.msra.mxu0 0
        %1576 = vmatprep.subr.bf16.mxu0 0
        %1577 = vmatpush1.bf16.xpose.msra.mxu0 0
        %1578 = vmatprep.subr.bf16.mxu0 0
        %1579 = vmatpush1.bf16.xpose.msra.mxu0 0
        %1580 = vmatprep.subr.bf16.mxu0 0
        %1581 = vmatpush1.bf16.xpose.msra.mxu0 0
        %1582 = vmatprep.subr.bf16.mxu0 0
        %1583 = vmatpush1.bf16.xpose.msra.mxu0 0
        %1584 = vmatprep.subr.bf16.mxu0 0
        %1585 = vmatpush1.bf16.xpose.msra.mxu0 0
        %1586 = vmatprep.subr.bf16.mxu0 0
        %1587 = vmatpush1.bf16.xpose.msra.mxu0 0
        %1588 = vmatprep.subr.bf16.mxu0 0
        %1589 = vmatpush1.bf16.xpose.msra.mxu0 0
        %1590 = vmatprep.mubr.bf16.mxu0 0
        %1591 = vmatmul.mubr.bf16.gmra.mrb[0].mxu0 %v1553
        %v1592 = vpop.f32.mrb[0].mxu0
        %v1593 = vadd.f32 0.0, %v1592
        %v1594 = vpop.f32.mrb[0].mxu0
        %v1595 = vpop.f32.mrb[0].mxu0
        %v1596 = vadd.f32 0.0, %v1595
        %v1597 = vpop.f32.mrb[0].mxu0
        %1598 = vdwg.mxu0
        %v1599 = vmul.f32 %v1546, 0.25
        %v1600 = vmul.f32 %v1549, 0.25
        %v1601 = vmul.f32 %v1593, 0.25
        %v1602 = vmul.f32 %v1596, 0.25
        %v1604 = vlaneseq
        %v1605 = vshrl.u32 %v1604, 7
        %v1606 = vsub.s32 0, %v1605
        %v1607 = vrot.slane %v1276, %v1606
        %v1609 = vadd.f32 %v1599, %v1607
        %v1610 = vadd.f32 %v1600, %v1607
        %v1611 = vadd.f32 %v1601, %v1607
        %v1612 = vadd.f32 %v1602, %v1607
        %v1613 = vsel %vm1504, %v1609, -inf
        %1614 = vmax.xlane.f32.xlu0 %v1613
        %v1615 = vpop.xlane.xlu0 %1614
        %v1616 = vsel %vm1504, %v1610, -inf
        %1617 = vmax.xlane.f32.xlu0 %v1616
        %v1618 = vpop.xlane.xlu0 %1617
        %v1619 = vsel %vm1504, %v1611, -inf
        %1620 = vmax.xlane.f32.xlu0 %v1619
        %v1621 = vpop.xlane.xlu0 %1620
        %v1622 = vsel %vm1504, %v1612, -inf
        %1623 = vmax.xlane.f32.xlu0 %v1622
        %v1624 = vpop.xlane.xlu0 %1623
        %v1625 = vsub.f32 %v1609, %v1615
        %v1626 = vsub.f32 %v1610, %v1618
        %v1627 = vsub.f32 %v1611, %v1621
        %v1628 = vsub.f32 %v1612, %v1624
        %v1629 = vmul.f32 %v1625, 1.442695
        %v1630 = vpow.pop %v1629
        %v1631 = vmul.f32 %v1626, 1.442695
        %v1632 = vpow.pop %v1631
        %v1633 = vmul.f32 %v1627, 1.442695
        %v1634 = vpow.pop %v1633
        %v1635 = vmul.f32 %v1628, 1.442695
        %v1636 = vpow.pop %v1635
        %v1637 = vsel %vm1504, %v1630, 0.0
        %1638 = vadd.xlane.f32.xlu0 %v1637
        %v1639 = vpop.xlane.xlu0 %1638
        %v1640 = vsel %vm1504, %v1632, 0.0
        %1641 = vadd.xlane.f32.xlu0 %v1640
        %v1642 = vpop.xlane.xlu0 %1641
        %v1643 = vsel %vm1504, %v1634, 0.0
        %1644 = vadd.xlane.f32.xlu0 %v1643
        %v1645 = vpop.xlane.xlu0 %1644
        %v1646 = vsel %vm1504, %v1636, 0.0
        %1647 = vadd.xlane.f32.xlu0 %v1646
        %v1648 = vpop.xlane.xlu0 %1647
        %v1649 = vrcp.pop %v1639
        %v1650 = vrcp.pop %v1642
        %v1651 = vrcp.pop %v1645
        %v1652 = vrcp.pop %v1648
        %v1653 = vmul.f32 %v1630, %v1649
        %v1654 = vmul.f32 %v1632, %v1650
        %v1655 = vmul.f32 %v1634, %v1651
        %v1656 = vmul.f32 %v1636, %v1652
        %v1657 = vpack.c.bf16 %v1654, %v1653
        %v1658 = vpack.c.bf16 %v1656, %v1655
        %v1660 = vsel %vm1504, %v1657, 0
        %1662 = vmatprep.subr.bf16.mxu0 0
        %1663 = vmatpush1.bf16.msra.mxu0 %v1502
        %1664 = vmatprep.subr.bf16.mxu0 0
        %1665 = vmatpush1.bf16.msra.mxu0 0
        %1666 = vmatprep.subr.bf16.mxu0 0
        %1667 = vmatpush1.bf16.msra.mxu0 0
        %1668 = vmatprep.subr.bf16.mxu0 0
        %1669 = vmatpush1.bf16.msra.mxu0 0
        %1670 = vmatprep.subr.bf16.mxu0 0
        %1671 = vmatpush1.bf16.msra.mxu0 0
        %1672 = vmatprep.subr.bf16.mxu0 0
        %1673 = vmatpush1.bf16.msra.mxu0 0
        %1674 = vmatprep.subr.bf16.mxu0 0
        %1675 = vmatpush1.bf16.msra.mxu0 0
        %1676 = vmatprep.subr.bf16.mxu0 0
        %1677 = vmatpush1.bf16.msra.mxu0 0
        %1678 = vmatprep.subr.bf16.mxu0 0
        %1679 = vmatpush1.bf16.msra.mxu0 0
        %1680 = vmatprep.subr.bf16.mxu0 0
        %1681 = vmatpush1.bf16.msra.mxu0 0
        %1682 = vmatprep.subr.bf16.mxu0 0
        %1683 = vmatpush1.bf16.msra.mxu0 0
        %1684 = vmatprep.subr.bf16.mxu0 0
        %1685 = vmatpush1.bf16.msra.mxu0 0
        %1686 = vmatprep.subr.bf16.mxu0 0
        %1687 = vmatpush1.bf16.msra.mxu0 0
        %1688 = vmatprep.subr.bf16.mxu0 0
        %1689 = vmatpush1.bf16.msra.mxu0 0
        %1690 = vmatprep.subr.bf16.mxu0 0
        %1691 = vmatpush1.bf16.msra.mxu0 0
        %1692 = vmatprep.subr.bf16.mxu0 0
        %1693 = vmatpush1.bf16.msra.mxu0 0
        %1694 = vmatprep.mubr.bf16.mxu0 0
        %1695 = vmatmul.mubr.bf16.gmra.mrb[0].mxu0 %v1660
        %v1696 = vpop.f32.mrb[0].mxu0
        %v1697 = vadd.f32 0.0, %v1696
        %v1698 = vpop.f32.mrb[0].mxu0
        %v1699 = vpop.f32.mrb[0].mxu0
        %v1700 = vadd.f32 0.0, %v1699
        %v1701 = vpop.f32.mrb[0].mxu0
        %1702 = vdwg.mxu0
        %v1704 = vsel %vm1504, %v1658, 0
        %1706 = vmatprep.subr.bf16.mxu0 0
        %1707 = vmatpush1.bf16.msra.mxu0 %v1503
        %1708 = vmatprep.subr.bf16.mxu0 0
        %1709 = vmatpush1.bf16.msra.mxu0 0
        %1710 = vmatprep.subr.bf16.mxu0 0
        %1711 = vmatpush1.bf16.msra.mxu0 0
        %1712 = vmatprep.subr.bf16.mxu0 0
        %1713 = vmatpush1.bf16.msra.mxu0 0
        %1714 = vmatprep.subr.bf16.mxu0 0
        %1715 = vmatpush1.bf16.msra.mxu0 0
        %1716 = vmatprep.subr.bf16.mxu0 0
        %1717 = vmatpush1.bf16.msra.mxu0 0
        %1718 = vmatprep.subr.bf16.mxu0 0
        %1719 = vmatpush1.bf16.msra.mxu0 0
        %1720 = vmatprep.subr.bf16.mxu0 0
        %1721 = vmatpush1.bf16.msra.mxu0 0
        %1722 = vmatprep.subr.bf16.mxu0 0
        %1723 = vmatpush1.bf16.msra.mxu0 0
        %1724 = vmatprep.subr.bf16.mxu0 0
        %1725 = vmatpush1.bf16.msra.mxu0 0
        %1726 = vmatprep.subr.bf16.mxu0 0
        %1727 = vmatpush1.bf16.msra.mxu0 0
        %1728 = vmatprep.subr.bf16.mxu0 0
        %1729 = vmatpush1.bf16.msra.mxu0 0
        %1730 = vmatprep.subr.bf16.mxu0 0
        %1731 = vmatpush1.bf16.msra.mxu0 0
        %1732 = vmatprep.subr.bf16.mxu0 0
        %1733 = vmatpush1.bf16.msra.mxu0 0
        %1734 = vmatprep.subr.bf16.mxu0 0
        %1735 = vmatpush1.bf16.msra.mxu0 0
        %1736 = vmatprep.subr.bf16.mxu0 0
        %1737 = vmatpush1.bf16.msra.mxu0 0
        %1738 = vmatprep.mubr.bf16.mxu0 0
        %1739 = vmatmul.mubr.bf16.gmra.mrb[0].mxu0 %v1704
        %v1740 = vpop.f32.mrb[0].mxu0
        %v1741 = vadd.f32 0.0, %v1740
        %v1742 = vpop.f32.mrb[0].mxu0
        %v1743 = vpop.f32.mrb[0].mxu0
        %v1744 = vadd.f32 0.0, %v1743
        %v1745 = vpop.f32.mrb[0].mxu0
        %1746 = vdwg.mxu0
        %v1747 = vld [vmem:[%s1141] sm:$0xf]
        %v1748 = vld [vmem:[%s1141 + $0x4] sm:$0xf]
        %v1749 = vld [vmem:[%s1141 + $0x8] sm:$0xf]
        %v1750 = vld [vmem:[%s1141 + $0xc] sm:$0xf]
        %v1751 = vld [vmem:[%s950] sm:$0x1]
        %v1753 = vlaneseq
        %v1754 = vshrl.u32 %v1753, 7
        %v1755 = vsub.s32 0, %v1754
        %v1756 = vrot.slane %v1751, %v1755
        %v1758 = vadd.f32 %v1272, %v1756
        %v1759 = vadd.f32 %v1273, %v1756
        %v1760 = vpack.c.bf16 %v1700, %v1697
        %v1763 = vunpack.c.l.b16 %v1747
        %v1764 = vunpack.c.l.b16 %v1748
        %v1765 = vpack.c.b16 %v1764, %v1763
        %v1768 = vsel %vm1504, %v1760, 0
        %1770 = vmatprep.subr.bf16.mxu0 0
        %1771 = vmatpush1.bf16.msra.mxu0 %v1765
        %1772 = vmatprep.subr.bf16.mxu0 0
        %1773 = vmatpush1.bf16.msra.mxu0 0
        %1774 = vmatprep.subr.bf16.mxu0 0
        %1775 = vmatpush1.bf16.msra.mxu0 0
        %1776 = vmatprep.subr.bf16.mxu0 0
        %1777 = vmatpush1.bf16.msra.mxu0 0
        %1778 = vmatprep.subr.bf16.mxu0 0
        %1779 = vmatpush1.bf16.msra.mxu0 0
        %1780 = vmatprep.subr.bf16.mxu0 0
        %1781 = vmatpush1.bf16.msra.mxu0 0
        %1782 = vmatprep.subr.bf16.mxu0 0
        %1783 = vmatpush1.bf16.msra.mxu0 0
        %1784 = vmatprep.subr.bf16.mxu0 0
        %1785 = vmatpush1.bf16.msra.mxu0 0
        %1786 = vmatprep.subr.bf16.mxu0 0
        %1787 = vmatpush1.bf16.msra.mxu0 0
        %1788 = vmatprep.subr.bf16.mxu0 0
        %1789 = vmatpush1.bf16.msra.mxu0 0
        %1790 = vmatprep.subr.bf16.mxu0 0
        %1791 = vmatpush1.bf16.msra.mxu0 0
        %1792 = vmatprep.subr.bf16.mxu0 0
        %1793 = vmatpush1.bf16.msra.mxu0 0
        %1794 = vmatprep.subr.bf16.mxu0 0
        %1795 = vmatpush1.bf16.msra.mxu0 0
        %1796 = vmatprep.subr.bf16.mxu0 0
        %1797 = vmatpush1.bf16.msra.mxu0 0
        %1798 = vmatprep.subr.bf16.mxu0 0
        %1799 = vmatpush1.bf16.msra.mxu0 0
        %1800 = vmatprep.subr.bf16.mxu0 0
        %1801 = vmatpush1.bf16.msra.mxu0 0
        %1802 = vmatprep.mubr.bf16.mxu0 0
        %1803 = vmatmul.mubr.bf16.gmra.mrb[0].mxu0 %v1768
        %v1804 = vpop.f32.mrb[0].mxu0
        %v1805 = vadd.f32 0.0, %v1804
        %v1806 = vpop.f32.mrb[0].mxu0
        %v1807 = vpop.f32.mrb[0].mxu0
        %v1808 = vadd.f32 0.0, %v1807
        %v1809 = vpop.f32.mrb[0].mxu0
        %1810 = vdwg.mxu0
        %v1811 = vadd.f32 %v1758, %v1805
        %v1812 = vadd.f32 %v1759, %v1808
        %v1813 = vpack.c.bf16 %v1744, %v1741
        %v1816 = vunpack.c.l.b16 %v1749
        %v1817 = vunpack.c.l.b16 %v1750
        %v1818 = vpack.c.b16 %v1817, %v1816
        %v1821 = vsel %vm1504, %v1813, 0
        %1823 = vmatprep.subr.bf16.mxu0 0
        %1824 = vmatpush1.bf16.msra.mxu0 %v1818
        %1825 = vmatprep.subr.bf16.mxu0 0
        %1826 = vmatpush1.bf16.msra.mxu0 0
        %1827 = vmatprep.subr.bf16.mxu0 0
        %1828 = vmatpush1.bf16.msra.mxu0 0
        %1829 = vmatprep.subr.bf16.mxu0 0
        %1830 = vmatpush1.bf16.msra.mxu0 0
        %1831 = vmatprep.subr.bf16.mxu0 0
        %1832 = vmatpush1.bf16.msra.mxu0 0
        %1833 = vmatprep.subr.bf16.mxu0 0
        %1834 = vmatpush1.bf16.msra.mxu0 0
        %1835 = vmatprep.subr.bf16.mxu0 0
        %1836 = vmatpush1.bf16.msra.mxu0 0
        %1837 = vmatprep.subr.bf16.mxu0 0
        %1838 = vmatpush1.bf16.msra.mxu0 0
        %1839 = vmatprep.subr.bf16.mxu0 0
        %1840 = vmatpush1.bf16.msra.mxu0 0
        %1841 = vmatprep.subr.bf16.mxu0 0
        %1842 = vmatpush1.bf16.msra.mxu0 0
        %1843 = vmatprep.subr.bf16.mxu0 0
        %1844 = vmatpush1.bf16.msra.mxu0 0
        %1845 = vmatprep.subr.bf16.mxu0 0
        %1846 = vmatpush1.bf16.msra.mxu0 0
        %1847 = vmatprep.subr.bf16.mxu0 0
        %1848 = vmatpush1.bf16.msra.mxu0 0
        %1849 = vmatprep.subr.bf16.mxu0 0
        %1850 = vmatpush1.bf16.msra.mxu0 0
        %1851 = vmatprep.subr.bf16.mxu0 0
        %1852 = vmatpush1.bf16.msra.mxu0 0
        %1853 = vmatprep.subr.bf16.mxu0 0
        %1854 = vmatpush1.bf16.msra.mxu0 0
        %1855 = vmatprep.mubr.bf16.mxu0 0
        %1856 = vmatmul.mubr.bf16.gmra.mrb[0].mxu0 %v1821
        %v1857 = vpop.f32.mrb[0].mxu0
        %v1858 = vadd.f32 0.0, %v1857
        %v1859 = vpop.f32.mrb[0].mxu0
        %v1860 = vpop.f32.mrb[0].mxu0
        %v1861 = vadd.f32 0.0, %v1860
        %v1862 = vpop.f32.mrb[0].mxu0
        %1863 = vdwg.mxu0
        %v1864 = vadd.f32 %v1811, %v1858
        %v1865 = vadd.f32 %v1812, %v1861
        %v1866 = vld [vmem:[%s958] sm:$0x1]
        %v1867 = vld [vmem:[%s966] sm:$0x1]
        %v1868 = vsel %vm1301, %v1864, 0.0
        %1869 = vadd.xlane.f32.xlu0 %v1868
        %v1870 = vpop.xlane.xlu0 %1869
        %v1871 = vsel %vm1301, %v1865, 0.0
        %1872 = vadd.xlane.f32.xlu0 %v1871
        %v1873 = vpop.xlane.xlu0 %1872
        %v1874 = vrcp.pop 32.0
        %v1875 = vmul.f32 %v1870, %v1874
        %v1876 = vmul.f32 %v1873, %v1874
        %v1877 = vsub.f32 %v1864, %v1875
        %v1878 = vsub.f32 %v1865, %v1876
        %v1879 = vmul.f32 %v1877, %v1877
        %v1880 = vmul.f32 %v1878, %v1878
        %v1881 = vsel %vm1301, %v1879, 0.0
        %1882 = vadd.xlane.f32.xlu0 %v1881
        %v1883 = vpop.xlane.xlu0 %1882
        %v1884 = vsel %vm1301, %v1880, 0.0
        %1885 = vadd.xlane.f32.xlu0 %v1884
        %v1886 = vpop.xlane.xlu0 %1885
        %v1887 = vmul.f32 %v1883, %v1874
        %v1888 = vmul.f32 %v1886, %v1874
        %v1889 = vadd.f32 %v1887, 1e-05
        %v1890 = vadd.f32 %v1888, 1e-05
        %v1891 = vrsqrt.pop %v1889
        %v1892 = vrsqrt.pop %v1890
        %v1893 = vmul.f32 %v1877, %v1891
        %v1894 = vmul.f32 %v1878, %v1892
        %v1896 = vlaneseq
        %v1897 = vshrl.u32 %v1896, 7
        %v1898 = vsub.s32 0, %v1897
        %v1899 = vrot.slane %v1866, %v1898
        %v1901 = vmul.f32 %v1893, %v1899
        %v1902 = vmul.f32 %v1894, %v1899
        %v1904 = vlaneseq
        %v1905 = vshrl.u32 %v1904, 7
        %v1906 = vsub.s32 0, %v1905
        %v1907 = vrot.slane %v1867, %v1906
        %v1909 = vadd.f32 %v1901, %v1907
        %v1910 = vadd.f32 %v1902, %v1907
        %1912 = vset.pattern.permute.xlu0 0
        %1913 = vperm.xlu0 %1912, %v1274
        %v1914 = vpop.permute.xlu0 %1913
        %1917 = vset.pattern.permute.xlu0 0
        %1918 = vperm.xlu0 %1917, %v1275
        %v1919 = vpop.permute.xlu0 %1918
        %v1921 = vmul.f32 %v1909, %v1914
        %v1922 = vmul.f32 %v1910, %v1919
        %v1923 = vpack.c.bf16 %v1922, %v1921
        %v1924 = vld [vmem:[%s1146] sm:$0xf]
        %v1925 = vld [vmem:[%s1146 + $0x4] sm:$0xf]
        %v1926 = vld [vmem:[%s1146 + $0x8] sm:$0xf]
        %v1927 = vld [vmem:[%s1146 + $0xc] sm:$0xf]
        %v1928 = vld [vmem:[%s1149] sm:$0x1]
        %v1930 = vlaneseq
        %v1931 = vshrl.u32 %v1930, 7
        %v1932 = vsub.s32 0, %v1931
        %v1933 = vrot.slane %v1928, %v1932
        %v1939 = vunpack.c.l.b16 %v1924
        %v1940 = vunpack.c.l.b16 %v1925
        %v1941 = vunpack.c.l.b16 %v1926
        %v1942 = vunpack.c.l.b16 %v1927
        %v1943 = vpack.c.b16 %v1940, %v1939
        %v1944 = vpack.c.b16 %v1942, %v1941
        %v1948 = vsel %vm1301, %v1923, 0
        %1950 = vmatprep.subr.bf16.mxu0 0
        %1951 = vmatpush1.bf16.msra.mxu0 %v1943
        %1952 = vmatprep.subr.bf16.mxu0 0
        %1953 = vmatpush1.bf16.msra.mxu0 %v1944
        %1954 = vmatprep.subr.bf16.mxu0 0
        %1955 = vmatpush1.bf16.msra.mxu0 0
        %1956 = vmatprep.subr.bf16.mxu0 0
        %1957 = vmatpush1.bf16.msra.mxu0 0
        %1958 = vmatprep.subr.bf16.mxu0 0
        %1959 = vmatpush1.bf16.msra.mxu0 0
        %1960 = vmatprep.subr.bf16.mxu0 0
        %1961 = vmatpush1.bf16.msra.mxu0 0
        %1962 = vmatprep.subr.bf16.mxu0 0
        %1963 = vmatpush1.bf16.msra.mxu0 0
        %1964 = vmatprep.subr.bf16.mxu0 0
        %1965 = vmatpush1.bf16.msra.mxu0 0
        %1966 = vmatprep.subr.bf16.mxu0 0
        %1967 = vmatpush1.bf16.msra.mxu0 0
        %1968 = vmatprep.subr.bf16.mxu0 0
        %1969 = vmatpush1.bf16.msra.mxu0 0
        %1970 = vmatprep.subr.bf16.mxu0 0
        %1971 = vmatpush1.bf16.msra.mxu0 0
        %1972 = vmatprep.subr.bf16.mxu0 0
        %1973 = vmatpush1.bf16.msra.mxu0 0
        %1974 = vmatprep.subr.bf16.mxu0 0
        %1975 = vmatpush1.bf16.msra.mxu0 0
        %1976 = vmatprep.subr.bf16.mxu0 0
        %1977 = vmatpush1.bf16.msra.mxu0 0
        %1978 = vmatprep.subr.bf16.mxu0 0
        %1979 = vmatpush1.bf16.msra.mxu0 0
        %1980 = vmatprep.subr.bf16.mxu0 0
        %1981 = vmatpush1.bf16.msra.mxu0 0
        %1982 = vmatprep.mubr.bf16.mxu0 0
        %1983 = vmatmul.mubr.bf16.gmra.mrb[0].mxu0 %v1948
        %v1984 = vpop.f32.mrb[0].mxu0
        %v1985 = vadd.f32 %v1933, %v1984
        %v1986 = vpop.f32.mrb[0].mxu0
        %v1987 = vpop.f32.mrb[0].mxu0
        %v1988 = vadd.f32 %v1933, %v1987
        %v1989 = vpop.f32.mrb[0].mxu0
        %1990 = vdwg.mxu0
        %v1991 = vmax.f32 %v1985, 0.0
        %v1992 = vmax.f32 %v1988, 0.0
        %v1993 = vpack.c.bf16 %v1992, %v1991
        %v1994 = vld [vmem:[%s1154] sm:$0xf]
        %v1995 = vld [vmem:[%s1154 + $0x4] sm:$0xf]
        %v1996 = vld [vmem:[%s1154 + $0x8] sm:$0xf]
        %v1997 = vld [vmem:[%s1154 + $0xc] sm:$0xf]
        %v1998 = vld [vmem:[%s1154 + $0x10] sm:$0xf]
        %v1999 = vld [vmem:[%s1154 + $0x14] sm:$0xf]
        %v2000 = vld [vmem:[%s1154 + $0x18] sm:$0xf]
        %v2001 = vld [vmem:[%s1154 + $0x1c] sm:$0xf]
        %v2002 = vld [vmem:[%s1157] sm:$0x1]
        %v2004 = vlaneseq
        %v2005 = vshrl.u32 %v2004, 7
        %v2006 = vsub.s32 0, %v2005
        %v2007 = vrot.slane %v2002, %v2006
        %v2017 = vunpack.c.l.b16 %v1994
        %v2018 = vunpack.c.l.b16 %v1995
        %v2019 = vunpack.c.l.b16 %v1996
        %v2020 = vunpack.c.l.b16 %v1997
        %v2021 = vunpack.c.l.b16 %v1998
        %v2022 = vunpack.c.l.b16 %v1999
        %v2023 = vunpack.c.l.b16 %v2000
        %v2024 = vunpack.c.l.b16 %v2001
        %v2025 = vpack.c.b16 %v2018, %v2017
        %v2026 = vpack.c.b16 %v2020, %v2019
        %v2027 = vpack.c.b16 %v2022, %v2021
        %v2028 = vpack.c.b16 %v2024, %v2023
        %vm2033 = vcmask 523264
        %v2035 = vsel %vm2033, %v1993, 0
        %2037 = vmatprep.subr.bf16.mxu0 0
        %2038 = vmatpush1.bf16.msra.mxu0 %v2025
        %2039 = vmatprep.subr.bf16.mxu0 0
        %2040 = vmatpush1.bf16.msra.mxu0 %v2026
        %2041 = vmatprep.subr.bf16.mxu0 0
        %2042 = vmatpush1.bf16.msra.mxu0 %v2027
        %2043 = vmatprep.subr.bf16.mxu0 0
        %2044 = vmatpush1.bf16.msra.mxu0 %v2028
        %2045 = vmatprep.subr.bf16.mxu0 0
        %2046 = vmatpush1.bf16.msra.mxu0 0
        %2047 = vmatprep.subr.bf16.mxu0 0
        %2048 = vmatpush1.bf16.msra.mxu0 0
        %2049 = vmatprep.subr.bf16.mxu0 0
        %2050 = vmatpush1.bf16.msra.mxu0 0
        %2051 = vmatprep.subr.bf16.mxu0 0
        %2052 = vmatpush1.bf16.msra.mxu0 0
        %2053 = vmatprep.subr.bf16.mxu0 0
        %2054 = vmatpush1.bf16.msra.mxu0 0
        %2055 = vmatprep.subr.bf16.mxu0 0
        %2056 = vmatpush1.bf16.msra.mxu0 0
        %2057 = vmatprep.subr.bf16.mxu0 0
        %2058 = vmatpush1.bf16.msra.mxu0 0
        %2059 = vmatprep.subr.bf16.mxu0 0
        %2060 = vmatpush1.bf16.msra.mxu0 0
        %2061 = vmatprep.subr.bf16.mxu0 0
        %2062 = vmatpush1.bf16.msra.mxu0 0
        %2063 = vmatprep.subr.bf16.mxu0 0
        %2064 = vmatpush1.bf16.msra.mxu0 0
        %2065 = vmatprep.subr.bf16.mxu0 0
        %2066 = vmatpush1.bf16.msra.mxu0 0
        %2067 = vmatprep.subr.bf16.mxu0 0
        %2068 = vmatpush1.bf16.msra.mxu0 0
        %2069 = vmatprep.mubr.bf16.mxu0 0
        %2070 = vmatmul.mubr.bf16.gmra.mrb[0].mxu0 %v2035
        %v2071 = vpop.f32.mrb[0].mxu0
        %v2072 = vadd.f32 %v2007, %v2071
        %v2073 = vpop.f32.mrb[0].mxu0
        %v2074 = vpop.f32.mrb[0].mxu0
        %v2075 = vadd.f32 %v2007, %v2074
        %v2076 = vpop.f32.mrb[0].mxu0
        %2077 = vdwg.mxu0
        %v2078 = vadd.f32 %v2072, %v1921
        %v2079 = vadd.f32 %v2075, %v1922
        %v2080 = vld [vmem:[%s1160] sm:$0x1]
        %v2081 = vld [vmem:[%s1163] sm:$0x1]
        %v2082 = vsel %vm1301, %v2078, 0.0
        %2083 = vadd.xlane.f32.xlu0 %v2082
        %v2084 = vpop.xlane.xlu0 %2083
        %v2085 = vsel %vm1301, %v2079, 0.0
        %2086 = vadd.xlane.f32.xlu0 %v2085
        %v2087 = vpop.xlane.xlu0 %2086
        %v2088 = vmul.f32 %v2084, %v1874
        %v2089 = vmul.f32 %v2087, %v1874
        %v2090 = vsub.f32 %v2078, %v2088
        %v2091 = vsub.f32 %v2079, %v2089
        %v2092 = vmul.f32 %v2090, %v2090
        %v2093 = vmul.f32 %v2091, %v2091
        %v2094 = vsel %vm1301, %v2092, 0.0
        %2095 = vadd.xlane.f32.xlu0 %v2094
        %v2096 = vpop.xlane.xlu0 %2095
        %v2097 = vsel %vm1301, %v2093, 0.0
        %2098 = vadd.xlane.f32.xlu0 %v2097
        %v2099 = vpop.xlane.xlu0 %2098
        %v2100 = vmul.f32 %v2096, %v1874
        %v2101 = vmul.f32 %v2099, %v1874
        %v2102 = vadd.f32 %v2100, 1e-05
        %v2103 = vadd.f32 %v2101, 1e-05
        %v2104 = vrsqrt.pop %v2102
        %v2105 = vrsqrt.pop %v2103
        %v2106 = vmul.f32 %v2090, %v2104
        %v2107 = vmul.f32 %v2091, %v2105
        %v2109 = vlaneseq
        %v2110 = vshrl.u32 %v2109, 7
        %v2111 = vsub.s32 0, %v2110
        %v2112 = vrot.slane %v2080, %v2111
        %v2114 = vmul.f32 %v2106, %v2112
        %v2115 = vmul.f32 %v2107, %v2112
        %v2117 = vlaneseq
        %v2118 = vshrl.u32 %v2117, 7
        %v2119 = vsub.s32 0, %v2118
        %v2120 = vrot.slane %v2081, %v2119
        %v2122 = vadd.f32 %v2114, %v2120
        %v2123 = vadd.f32 %v2115, %v2120
        %v2124 = vmul.f32 %v2122, %v1914
        %v2125 = vmul.f32 %v2123, %v1919
        %2126 = vst.msk [vmem:[#allocation2] sm:$0xff] %vm1301, %v2124
        %2127 = vst.msk [vmem:[#allocation2 + $0x8] sm:$0xff] %vm1301, %v2125
        %p2128 = scmp.eq.s32.totalorder %s54, 1
        // Predicated region
        $region149: #{tpu_custom_call.1} parent=107 // pred_check
          %p2129 = pneg %p2128
        $region150: #{tpu_custom_call.1} parent=107 // pred_check_branch
          %2131 = sbr.rel (%p2129) target = $region152
        $region151: #{tpu_custom_call.1} parent=107 // pred_region
          %v2132 = vld [vmem:[#allocation2] sm:$0xff]
          %v2133 = vld [vmem:[#allocation2 + $0x8] sm:$0xff]
          %2134 = vst.msk [vmem:[%s1106] sm:$0xff] %vm1301, %v2132
          %2135 = vst.msk [vmem:[%s1106 + $0x8] sm:$0xff] %vm1301, %v2133
        $region152: #{tpu_custom_call.1} parent=107 // pred_fallthru
          _
        %s2136 = sand.u32 %s631, 1
        %s2137 = scalar_lea.sflag [#allocation5], %s2136
        %s2138 = sand.u32 %s631, 1
        %s2139 = smul.addr %s2138, 16
        %s2140 = scalar_lea.vmem [#allocation18], %s2139
        // Predicated region
        $region153: #{tpu_custom_call.1} parent=107 // pred_check
          %p2141 = pneg %p641
        $region154: #{tpu_custom_call.1} parent=107 // pred_check_branch
          %2143 = sbr.rel (%p2141) target = $region156
        $region155: #{tpu_custom_call.1} parent=107 // pred_region
          %s2145 = ssub.s32 256, 256
          %2146 = vsyncadd %s2137, %s2145
          %s2147 = smul.addr %s53, 2
          %s2148 = smul.addr %s2147, 128
          %s2149 = scalar_lea.hbm %s22, %s2148
          %s2150 = sshll.u32 %s2140, 4
          %s2151 = int_to_ptr.vmem [resolvable:$true] %s2150
          %2156 = dma.vmem_to_hbm [thread:$0]  %s2151, 256, %s2149, %s2137, 128, 128, 8
        $region156: #{tpu_custom_call.1} parent=107 // pred_fallthru
          _
      $region108: #{tpu_custom_call.1} parent=5 // pred_fallthru
        _
      %p2157 = scmp.le.s32.totalorder 2, %s44
      // Predicated region
      $region157: #{tpu_custom_call.1} parent=5 // pred_check
        %p2158 = pneg %p2157
      $region158: #{tpu_custom_call.1} parent=5 // pred_check_branch
        %2160 = sbr.rel (%p2158) target = $region160
      $region159: #{tpu_custom_call.1} parent=5 // pred_region
        %s2161 = ssub.s32 %s44, 2
        // Predicated region
        $region161: #{tpu_custom_call.1} parent=159 // pred_check
          %p2162 = pneg %p647
        $region162: #{tpu_custom_call.1} parent=159 // pred_check_branch
          %2164 = sbr.rel (%p2162) target = $region164
        $region163: #{tpu_custom_call.1} parent=159 // pred_region
          %s2165 = sand.u32 %s632, 1
          %s2166 = scalar_lea.sflag [#allocation5], %s2165
          %s2167 = sand.u32 %s632, 1
          %s2168 = smul.addr %s2167, 16
          %s2169 = scalar_lea.vmem [#allocation18], %s2168
          %2170 = dma.done %s2166, 256
        $region164: #{tpu_custom_call.1} parent=159 // pred_fallthru
          _
      $region160: #{tpu_custom_call.1} parent=5 // pred_fallthru
        _
    $region6: #{tpu_custom_call.1} parent=1 // loop_footer
      %s48 = sadd.s32 1, %s44
    $region7: #{tpu_custom_call.1} parent=1 // loop_footer_branch
      %43 = sbr.rel target = $region3
    $region8: #{tpu_custom_call.1} parent=1 // loop_exit
      _
    %2171 = vsyncpa [#allocation4], 1
    %s2172 = scalar_lea.sflag [#allocation4], 1
    %2173 = vsyncpa %s2172, 1
    %2174 = vsyncpa [#allocation7], 1
    %2175 = vsyncpa [#allocation10], 1
    %s2176 = scalar_lea.sflag [#allocation10], 1
    %2177 = vsyncpa %s2176, 1
    %2178 = vsyncpa [#allocation13], 1
    %s2179 = scalar_lea.sflag [#allocation13], 1
    %2180 = vsyncpa %s2179, 1
    %2181 = vsyncpa [#allocation16], 1
    %s2182 = scalar_lea.sflag [#allocation16], 1
    %2183 = vsyncpa %s2182, 1
    %2184 = vsyncpa [#allocation5], 1
    %s2185 = scalar_lea.sflag [#allocation5], 1
    %2186 = vsyncpa %s2185, 1

</llo_original>
